<compile_context>
chip_gen: v5e
topology: v5e:2x2
jax: 0.10.0
libtpu: 0.0.40
codegen_flags: <defaults>
</compile_context>

<pallas_src>
import functools

import jax
import jax.numpy as jnp
from jax.experimental import pallas as pl
from jax.experimental.pallas import tpu as pltpu


# --------------------------------------------------------------------------- #
# Kernel helpers
# --------------------------------------------------------------------------- #
def _layernorm(x, gamma, beta, eps=1e-5):
    # Fused single-pass statistics: var = E[x^2] - mean^2 (halves the
    # cross-lane XLU reductions vs. two jnp.mean passes).
    inv_n = 1.0 / x.shape[-1]
    s1 = jnp.sum(x, axis=-1, keepdims=True)
    s2 = jnp.sum(x * x, axis=-1, keepdims=True)
    mean = s1 * inv_n
    var = jnp.maximum(s2 * inv_n - mean * mean, 0.0)
    return (x - mean) * jax.lax.rsqrt(var + eps) * gamma + beta


def encoder_layer_kernel(n_heads, tq,
                         bias_ref, x_ref,
                         wq_ref, wk_ref, wv_ref, wo_ref,
                         bq_ref, bk_ref, bv_ref, bo_ref,
                         w1_ref, b1_ref, w2_ref, b2_ref,
                         g1_ref, be1_ref, g2_ref, be2_ref,
                         o_ref,
                         k_scratch, v_scratch):
    H = n_heads
    S = x_ref.shape[1]
    D = x_ref.shape[2]
    dh = D // H
    scale = 1.0 / (dh ** 0.5)
    mm = wq_ref.dtype                     # matmul operand dtype (f32 or bf16)

    q_idx = pl.program_id(1)

    # ---- K/V projections: computed ONCE per batch element (first query tile)
    # into persistent VMEM scratch, pre-split per head, reused by later tiles.
    @pl.when(q_idx == 0)
    def _():
        xf = x_ref[0].astype(mm)                                    # (S, D)
        k = jnp.dot(xf, wk_ref[...],
                    preferred_element_type=jnp.float32) + bk_ref[...]
        v = jnp.dot(xf, wv_ref[...],
                    preferred_element_type=jnp.float32) + bv_ref[...]
        k_scratch[...] = jnp.stack(
            [k[:, h * dh:(h + 1) * dh] for h in range(H)], axis=0).astype(mm)
        v_scratch[...] = jnp.stack(
            [v[:, h * dh:(h + 1) * dh] for h in range(H)], axis=0).astype(mm)

    # ---- query rows of this tile, sliced from the resident full-seq block ----
    start = pl.multiple_of(q_idx * tq, tq)
    xq = x_ref[0, pl.ds(start, tq), :]                              # (TQ, D)
    bias = bias_ref[0]                                              # (1,  S)

    # ---- Q projection (MXU, f32 accumulation); 1/sqrt(dh) folded in once ----
    q = (jnp.dot(xq.astype(mm), wq_ref[...],
                 preferred_element_type=jnp.float32)
         + bq_ref[...]) * scale                                     # (TQ, D)
    qh = jnp.stack([q[:, h * dh:(h + 1) * dh] for h in range(H)],
                   axis=0)                                          # (H,TQ,dh)

    kh = k_scratch[...]                                             # (H,S,dh)
    vh = v_scratch[...]                                             # (H,S,dh)

    # ---- batched attention over all heads (softmax / mask math in f32) ----
    scores = jnp.einsum("hqd,hkd->hqk", qh.astype(mm), kh,
                        preferred_element_type=jnp.float32)         # (H,TQ,S)
    scores = scores + bias              # additive mask (-1e9 on masked keys)
    m = jnp.max(scores, axis=-1, keepdims=True)
    e = jnp.exp(scores - m)
    # approx reciprocal runs on the EUP slot; ~1e-3 relative softmax error,
    # covered by the test tolerances below.
    p = e * pl.reciprocal(jnp.sum(e, axis=-1, keepdims=True), approx=True)
    ctx = jnp.einsum("hqk,hkd->hqd", p.astype(mm), vh,
                     preferred_element_type=jnp.float32)            # (H,TQ,dh)

    # ---- output projection on the concatenated heads (full K = D matmul) ----
    ctx_cat = jnp.concatenate([ctx[h] for h in range(H)], axis=-1)  # (TQ, D)
    attn = jnp.dot(ctx_cat.astype(mm), wo_ref[...],
                   preferred_element_type=jnp.float32) + bo_ref[...]

    # ---- residual + LayerNorm 1 (f32 vector math) ----
    h1 = _layernorm(xq + attn, g1_ref[...], be1_ref[...])

    # ---- feed-forward ----
    ff = jnp.dot(h1.astype(mm), w1_ref[...],
                 preferred_element_type=jnp.float32) + b1_ref[...]
    ff = jnp.maximum(ff, 0.0)
    ff = jnp.dot(ff.astype(mm), w2_ref[...],
                 preferred_element_type=jnp.float32) + b2_ref[...]

    # ---- residual + LayerNorm 2 ----
    out = _layernorm(h1 + ff, g2_ref[...], be2_ref[...])
    o_ref[0] = out.astype(o_ref.dtype)


# --------------------------------------------------------------------------- #
# VMEM-aware tiling
# --------------------------------------------------------------------------- #
def _round_up(n, m):
    return ((n + m - 1) // m) * m


def _vmem_limit_bytes():
    try:
        cap = pltpu.get_tpu_info().vmem_capacity_bytes
    except Exception:
        cap = 64 * 1024 * 1024          # conservative (v7x-sized) fallback
    # ~75% of physical VMEM: ≈48 MiB on v7x (64 MiB), ≈96 MiB on v5e/v6e.
    return max(int(cap * 3 // 4), 32 * 1024 * 1024)


def _vmem_bytes_estimate(S, D, H, DFF, TQ, x_bytes, mm_bytes):
    dh = D // H
    lane = lambda n: _round_up(n, 128)
    sub = lambda n: _round_up(n, 8)
    est = 0
    # Double-buffered pipelined blocks.
    est += 2 * sub(S) * lane(D) * x_bytes                 # full-sequence x
    est += 2 * sub(TQ) * lane(D) * x_bytes                # output tile
    est += 2 * sub(1) * lane(S) * 4                       # mask bias
    est += 2 * (4 * sub(D) * lane(D)
                + sub(D) * lane(DFF) + sub(DFF) * lane(D)) * mm_bytes
    est += 2 * 9 * sub(1) * lane(D) * 4                   # biases / LN params
    est += 2 * sub(1) * lane(DFF) * 4                     # b1
    # Persistent per-head K/V scratch.
    est += 2 * H * sub(S) * lane(dh) * mm_bytes
    # Live attention / FFN intermediates (f32).
    est += 3 * H * sub(TQ) * lane(S) * 4                  # scores, exp, probs
    est += 2 * H * sub(TQ) * lane(dh) * 4                 # qh, ctx
    est += 4 * sub(TQ) * lane(D) * 4                      # q, attn, h1, out
    est += 2 * sub(TQ) * lane(DFF) * 4                    # ffn hidden
    return est


def _choose_query_tile(S, D, H, DFF, x_bytes, mm_bytes, budget):
    # Largest query tile (multiple of 8 dividing S, or S itself) whose
    # estimated live VMEM fits the per-generation budget.
    cands = {S} | {t for t in range(8, S + 1, 8) if S % t == 0}
    for tq in sorted(cands, reverse=True):
        if _vmem_bytes_estimate(S, D, H, DFF, tq, x_bytes, mm_bytes) <= budget:
            return tq
    # TODO(synk): flash-style K-blocked softmax when even the smallest query
    # tile does not fit (very long sequences); fall back to the smallest tile.
    return min(cands)


# --------------------------------------------------------------------------- #
# Wrappers
# --------------------------------------------------------------------------- #
def encoder_layer(x, mask_bias, params, n_heads):
    B, S, D = x.shape
    assert D % n_heads == 0, "d_model must be divisible by n_heads"
    dh = D // n_heads
    DFF = params["w1"].shape[-1]
    mm = params["wq"].dtype             # matmul dtype (weights pre-cast)

    vmem_limit = _vmem_limit_bytes()
    TQ = _choose_query_tile(S, D, n_heads, DFF,
                            jnp.dtype(x.dtype).itemsize,
                            jnp.dtype(mm).itemsize,
                            int(vmem_limit * 0.85))
    n_q = S // TQ

    weight_args = [params[k] for k in
                   ("wq", "wk", "wv", "wo", "bq", "bk", "bv", "bo",
                    "w1", "b1", "w2", "b2", "g1", "be1", "g2", "be2")]

    def const_spec(shp):
        nd = len(shp)
        return pl.BlockSpec(shp, lambda b, q, _n=nd: (0,) * _n)

    in_specs = [
        pl.BlockSpec((1, 1, S), lambda b, q: (b, 0, 0)),   # additive mask bias
        pl.BlockSpec((1, S, D), lambda b, q: (b, 0, 0)),   # full-sequence x
    ] + [const_spec(w.shape) for w in weight_args]

    kernel = functools.partial(encoder_layer_kernel, n_heads, TQ)
    return pl.pallas_call(
        kernel,
        out_shape=jax.ShapeDtypeStruct((B, S, D), x.dtype),
        grid=(B, n_q),
        in_specs=in_specs,
        out_specs=pl.BlockSpec((1, TQ, D), lambda b, q: (b, q, 0)),
        scratch_shapes=[pltpu.VMEM((n_heads, S, dh), mm),   # K (per head)
                        pltpu.VMEM((n_heads, S, dh), mm)],  # V (per head)
        compiler_params=pltpu.CompilerParams(
            dimension_semantics=("parallel", "arbitrary"),
            vmem_limit_bytes=vmem_limit),
    )(mask_bias, x, *weight_args)


_MATMUL_WEIGHT_KEYS = ("wq", "wk", "wv", "wo", "w1", "w2")


def prepare_layer_params(params, matmul_dtype):
    # Cast only the matmul weights (biases / LN params stay f32).  In a real
    # deployment this runs once at load time, not per forward.
    out = dict(params)
    for k in _MATMUL_WEIGHT_KEYS:
        out[k] = params[k].astype(matmul_dtype)
    return out


def encoder_forward(x, src_mask, layer_params, n_heads,
                    matmul_dtype=jnp.bfloat16):
    # Mirrors Encoder.forward: sequentially apply each encoder layer.
    # Additive mask bias: 0 where attendable, -1e9 where masked (computed once
    # wrapper-side so the kernel only adds instead of compare+select).
    mask_bias = (src_mask.astype(jnp.float32) - 1.0) * 1e9
    prepared = [prepare_layer_params(p, matmul_dtype) for p in layer_params]
    for p in prepared:
        x = encoder_layer(x, mask_bias, p, n_heads)
    return x


# --------------------------------------------------------------------------- #
# Pure-JAX reference (for sanity)
# --------------------------------------------------------------------------- #
def _ref_layernorm(x, gamma, beta, eps=1e-5):
    mean = jnp.mean(x, axis=-1, keepdims=True)
    var = jnp.mean((x - mean) ** 2, axis=-1, keepdims=True)
    return (x - mean) * jax.lax.rsqrt(var + eps) * gamma + beta


def _ref_layer(x, mask, p, n_heads):
    B, S, D = x.shape
    dh = D // n_heads
    q = x @ p["wq"] + p["bq"]
    k = x @ p["wk"] + p["bk"]
    v = x @ p["wv"] + p["bv"]

    def split(t):  # (B,S,D) -> (B,H,S,dh)
        return t.reshape(B, S, n_heads, dh).transpose(0, 2, 1, 3)

    qh, kh, vh = split(q), split(k), split(v)
    scores = jnp.einsum("bhqd,bhkd->bhqk", qh, kh) / (dh ** 0.5)
    scores = jnp.where(mask[:, None, :, :] > 0.0, scores, -1e9)
    attn = jax.nn.softmax(scores, axis=-1)
    ctx = jnp.einsum("bhqk,bhkd->bhqd", attn, vh)
    ctx = ctx.transpose(0, 2, 1, 3).reshape(B, S, D)
    h1 = _ref_layernorm(x + ctx @ p["wo"] + p["bo"], p["g1"], p["be1"])
    ff = jnp.maximum(h1 @ p["w1"] + p["b1"], 0.0) @ p["w2"] + p["b2"]
    return _ref_layernorm(h1 + ff, p["g2"], p["be2"])


def _ref_forward(x, mask, layer_params, n_heads):
    for p in layer_params:
        x = _ref_layer(x, mask, p, n_heads)
    return x


def make_layer_params(key, d_model, d_ff):
    ks = jax.random.split(key, 6)
    s = 0.1
    return {
        "wq": jax.random.normal(ks[0], (d_model, d_model), jnp.float32) * s,
        "wk": jax.random.normal(ks[1], (d_model, d_model), jnp.float32) * s,
        "wv": jax.random.normal(ks[2], (d_model, d_model), jnp.float32) * s,
        "wo": jax.random.normal(ks[3], (d_model, d_model), jnp.float32) * s,
        "bq": jnp.zeros((1, d_model), jnp.float32),
        "bk": jnp.zeros((1, d_model), jnp.float32),
        "bv": jnp.zeros((1, d_model), jnp.float32),
        "bo": jnp.zeros((1, d_model), jnp.float32),
        "w1": jax.random.normal(ks[4], (d_model, d_ff), jnp.float32) * s,
        "b1": jnp.zeros((1, d_ff), jnp.float32),
        "w2": jax.random.normal(ks[5], (d_ff, d_model), jnp.float32) * s,
        "b2": jnp.zeros((1, d_model), jnp.float32),
        "g1": jnp.ones((1, d_model), jnp.float32),
        "be1": jnp.zeros((1, d_model), jnp.float32),
        "g2": jnp.ones((1, d_model), jnp.float32),
        "be2": jnp.zeros((1, d_model), jnp.float32),
    }


if __name__ == "__main__":
    # Demo shapes kept tiny on purpose.  Real deployments should keep D, DFF
    # multiples of 128, dh >= 128 if possible, and S a multiple of 8.
    B, S, D, H, DFF, N_LAYERS = 2, 8, 32, 4, 64, 2

    root = jax.random.PRNGKey(0)
    kx, kp = jax.random.split(root)
    x = jax.random.normal(kx, (B, S, D), jnp.float32)

    # src_mask: last two key positions of batch element 1 are masked out.
    mask = jnp.ones((B, 1, S), jnp.float32)
    mask = mask.at[1, 0, S - 2:].set(0.0)

    layer_params = [make_layer_params(k, D, DFF)
                    for k in jax.random.split(kp, N_LAYERS)]

    ref = _ref_forward(x, mask, layer_params, H)

    # f32 matmul operands (tolerance allows the approx softmax reciprocal).
    out_f32 = jax.block_until_ready(
        encoder_forward(x, mask, layer_params, H, matmul_dtype=jnp.float32))
    assert out_f32.shape == (B, S, D)
    assert jnp.allclose(out_f32, ref, atol=1e-2, rtol=1e-2), "f32 mismatch"

    # bf16 matmul operands (default), f32 accumulation — looser tolerance.
    out_bf16 = jax.block_until_ready(
        encoder_forward(x, mask, layer_params, H, matmul_dtype=jnp.bfloat16))
    assert out_bf16.shape == (B, S, D)
    assert jnp.allclose(out_bf16, ref, atol=1e-1, rtol=1e-1), "bf16 mismatch"

    print("KERNEL_OK")
</pallas_src>

<mosaic_0001>
module attributes {stable_mosaic.version = 11 : i64} {
  func.func @encoder_layer_kernel(%arg0: i32, %arg1: i32, %arg2: memref<1x1x8xf32, #tpu.memory_space<vmem>>, %arg3: memref<1x8x32xf32, #tpu.memory_space<vmem>>, %arg4: memref<32x32xf32, #tpu.memory_space<vmem>>, %arg5: memref<32x32xf32, #tpu.memory_space<vmem>>, %arg6: memref<32x32xf32, #tpu.memory_space<vmem>>, %arg7: memref<32x32xf32, #tpu.memory_space<vmem>>, %arg8: memref<1x32xf32, #tpu.memory_space<vmem>>, %arg9: memref<1x32xf32, #tpu.memory_space<vmem>>, %arg10: memref<1x32xf32, #tpu.memory_space<vmem>>, %arg11: memref<1x32xf32, #tpu.memory_space<vmem>>, %arg12: memref<32x64xf32, #tpu.memory_space<vmem>>, %arg13: memref<1x64xf32, #tpu.memory_space<vmem>>, %arg14: memref<64x32xf32, #tpu.memory_space<vmem>>, %arg15: memref<1x32xf32, #tpu.memory_space<vmem>>, %arg16: memref<1x32xf32, #tpu.memory_space<vmem>>, %arg17: memref<1x32xf32, #tpu.memory_space<vmem>>, %arg18: memref<1x32xf32, #tpu.memory_space<vmem>>, %arg19: memref<1x32xf32, #tpu.memory_space<vmem>>, %arg20: memref<1x8x32xf32, #tpu.memory_space<vmem>>, %arg21: memref<4x8x8xf32, #tpu.memory_space<vmem>>, %arg22: memref<4x8x8xf32, #tpu.memory_space<vmem>>) attributes {dimension_semantics = [#tpu.dimension_semantics<parallel>, #tpu.dimension_semantics<arbitrary>], iteration_bounds = array<i64: 2, 1>, scalar_prefetch = 0 : i64, scratch_operands = 2 : i64, tpu.core_type = #tpu.core_type<tc>, window_params = [{transform_indices = @transform_0, window_bounds = array<i64: 1, 1, 8>}, {transform_indices = @transform_1, window_bounds = array<i64: 1, 8, 32>}, {pipeline_mode = #tpu.pipeline_mode<synchronous>, transform_indices = @transform_2, window_bounds = array<i64: 32, 32>}, {pipeline_mode = #tpu.pipeline_mode<synchronous>, transform_indices = @transform_3, window_bounds = array<i64: 32, 32>}, {pipeline_mode = #tpu.pipeline_mode<synchronous>, transform_indices = @transform_4, window_bounds = array<i64: 32, 32>}, {pipeline_mode = #tpu.pipeline_mode<synchronous>, transform_indices = @transform_5, window_bounds = array<i64: 32, 32>}, {pipeline_mode = #tpu.pipeline_mode<synchronous>, transform_indices = @transform_6, window_bounds = array<i64: 1, 32>}, {pipeline_mode = #tpu.pipeline_mode<synchronous>, transform_indices = @transform_7, window_bounds = array<i64: 1, 32>}, {pipeline_mode = #tpu.pipeline_mode<synchronous>, transform_indices = @transform_8, window_bounds = array<i64: 1, 32>}, {pipeline_mode = #tpu.pipeline_mode<synchronous>, transform_indices = @transform_9, window_bounds = array<i64: 1, 32>}, {pipeline_mode = #tpu.pipeline_mode<synchronous>, transform_indices = @transform_10, window_bounds = array<i64: 32, 64>}, {pipeline_mode = #tpu.pipeline_mode<synchronous>, transform_indices = @transform_11, window_bounds = array<i64: 1, 64>}, {pipeline_mode = #tpu.pipeline_mode<synchronous>, transform_indices = @transform_12, window_bounds = array<i64: 64, 32>}, {pipeline_mode = #tpu.pipeline_mode<synchronous>, transform_indices = @transform_13, window_bounds = array<i64: 1, 32>}, {pipeline_mode = #tpu.pipeline_mode<synchronous>, transform_indices = @transform_14, window_bounds = array<i64: 1, 32>}, {pipeline_mode = #tpu.pipeline_mode<synchronous>, transform_indices = @transform_15, window_bounds = array<i64: 1, 32>}, {pipeline_mode = #tpu.pipeline_mode<synchronous>, transform_indices = @transform_16, window_bounds = array<i64: 1, 32>}, {pipeline_mode = #tpu.pipeline_mode<synchronous>, transform_indices = @transform_17, window_bounds = array<i64: 1, 32>}, {transform_indices = @transform_18, window_bounds = array<i64: 1, 8, 32>}]} {
    %c0_i32 = arith.constant 0 : i32
    %0 = arith.cmpi eq, %arg1, %c0_i32 : i32
    %1 = arith.extui %0 : i1 to i32
    %c0_i32_0 = arith.constant 0 : i32
    %2 = arith.cmpi ne, %1, %c0_i32_0 : i32
    scf.if %2 {
      %c0_59 = arith.constant 0 : index
      %c0_60 = arith.constant 0 : index
      %c0_61 = arith.constant 0 : index
      %126 = vector.load %arg3[%c0_59, %c0_60, %c0_61] : memref<1x8x32xf32, #tpu.memory_space<vmem>>, vector<1x8x32xf32>
      %127 = vector.shape_cast %126 : vector<1x8x32xf32> to vector<8x32xf32>
      %c0_62 = arith.constant 0 : index
      %c0_63 = arith.constant 0 : index
      %128 = vector.load %arg5[%c0_62, %c0_63] : memref<32x32xf32, #tpu.memory_space<vmem>>, vector<32x32xf32>
      %cst_64 = arith.constant dense<0.000000e+00> : vector<8x32xf32>
      %129 = tpu.matmul %127, %128, %cst_64 {dimension_numbers = #tpu.dot_dimension_numbers<[1], [0], [0], [1], [0, 0, 1, 1], [], []>} : vector<8x32xf32>, vector<32x32xf32>, vector<8x32xf32> -> vector<8x32xf32>
      %c0_65 = arith.constant 0 : index
      %c0_66 = arith.constant 0 : index
      %130 = vector.load %arg9[%c0_65, %c0_66] : memref<1x32xf32, #tpu.memory_space<vmem>>, vector<1x32xf32>
      %131 = vector.broadcast %130 : vector<1x32xf32> to vector<8x32xf32>
      %132 = arith.addf %129, %131 : vector<8x32xf32>
      %c0_67 = arith.constant 0 : index
      %c0_68 = arith.constant 0 : index
      %133 = vector.load %arg6[%c0_67, %c0_68] : memref<32x32xf32, #tpu.memory_space<vmem>>, vector<32x32xf32>
      %cst_69 = arith.constant dense<0.000000e+00> : vector<8x32xf32>
      %134 = tpu.matmul %127, %133, %cst_69 {dimension_numbers = #tpu.dot_dimension_numbers<[1], [0], [0], [1], [0, 0, 1, 1], [], []>} : vector<8x32xf32>, vector<32x32xf32>, vector<8x32xf32> -> vector<8x32xf32>
      %c0_70 = arith.constant 0 : index
      %c0_71 = arith.constant 0 : index
      %135 = vector.load %arg10[%c0_70, %c0_71] : memref<1x32xf32, #tpu.memory_space<vmem>>, vector<1x32xf32>
      %136 = vector.broadcast %135 : vector<1x32xf32> to vector<8x32xf32>
      %137 = arith.addf %134, %136 : vector<8x32xf32>
      %138 = vector.extract_strided_slice %132 {offsets = [0, 0], sizes = [8, 8], strides = [1, 1]} : vector<8x32xf32> to vector<8x8xf32>
      %139 = vector.extract_strided_slice %132 {offsets = [0, 8], sizes = [8, 8], strides = [1, 1]} : vector<8x32xf32> to vector<8x8xf32>
      %140 = vector.extract_strided_slice %132 {offsets = [0, 16], sizes = [8, 8], strides = [1, 1]} : vector<8x32xf32> to vector<8x8xf32>
      %141 = vector.extract_strided_slice %132 {offsets = [0, 24], sizes = [8, 8], strides = [1, 1]} : vector<8x32xf32> to vector<8x8xf32>
      %142 = vector.shape_cast %138 : vector<8x8xf32> to vector<1x8x8xf32>
      %143 = vector.shape_cast %139 : vector<8x8xf32> to vector<1x8x8xf32>
      %144 = vector.shape_cast %140 : vector<8x8xf32> to vector<1x8x8xf32>
      %145 = vector.shape_cast %141 : vector<8x8xf32> to vector<1x8x8xf32>
      %146 = tpu.concatenate %142, %143, %144, %145 in 0 : vector<1x8x8xf32>, vector<1x8x8xf32>, vector<1x8x8xf32>, vector<1x8x8xf32> -> vector<4x8x8xf32>
      %c0_72 = arith.constant 0 : index
      %c0_73 = arith.constant 0 : index
      %c0_74 = arith.constant 0 : index
      %147 = vector.load %arg21[%c0_72, %c0_73, %c0_74] : memref<4x8x8xf32, #tpu.memory_space<vmem>>, vector<4x8x8xf32>
      tpu.vector_store %arg21[%c0_72, %c0_73, %c0_74], %146 {strides = array<i32>} : memref<4x8x8xf32, #tpu.memory_space<vmem>>, vector<4x8x8xf32>,
      %148 = vector.extract_strided_slice %137 {offsets = [0, 0], sizes = [8, 8], strides = [1, 1]} : vector<8x32xf32> to vector<8x8xf32>
      %149 = vector.extract_strided_slice %137 {offsets = [0, 8], sizes = [8, 8], strides = [1, 1]} : vector<8x32xf32> to vector<8x8xf32>
      %150 = vector.extract_strided_slice %137 {offsets = [0, 16], sizes = [8, 8], strides = [1, 1]} : vector<8x32xf32> to vector<8x8xf32>
      %151 = vector.extract_strided_slice %137 {offsets = [0, 24], sizes = [8, 8], strides = [1, 1]} : vector<8x32xf32> to vector<8x8xf32>
      %152 = vector.shape_cast %148 : vector<8x8xf32> to vector<1x8x8xf32>
      %153 = vector.shape_cast %149 : vector<8x8xf32> to vector<1x8x8xf32>
      %154 = vector.shape_cast %150 : vector<8x8xf32> to vector<1x8x8xf32>
      %155 = vector.shape_cast %151 : vector<8x8xf32> to vector<1x8x8xf32>
      %156 = tpu.concatenate %152, %153, %154, %155 in 0 : vector<1x8x8xf32>, vector<1x8x8xf32>, vector<1x8x8xf32>, vector<1x8x8xf32> -> vector<4x8x8xf32>
      %c0_75 = arith.constant 0 : index
      %c0_76 = arith.constant 0 : index
      %c0_77 = arith.constant 0 : index
      %157 = vector.load %arg22[%c0_75, %c0_76, %c0_77] : memref<4x8x8xf32, #tpu.memory_space<vmem>>, vector<4x8x8xf32>
      tpu.vector_store %arg22[%c0_75, %c0_76, %c0_77], %156 {strides = array<i32>} : memref<4x8x8xf32, #tpu.memory_space<vmem>>, vector<4x8x8xf32>,
    } else {
    }
    %c8_i32 = arith.constant 8 : i32
    %3 = arith.muli %arg1, %c8_i32 : i32
    %4 = tpu.assume_multiple %3, 8 : i32
    %c0 = arith.constant 0 : index
    %5 = arith.index_cast %4 : i32 to index
    %c0_1 = arith.constant 0 : index
    %6 = vector.load %arg3[%c0, %5, %c0_1] : memref<1x8x32xf32, #tpu.memory_space<vmem>>, vector<1x8x32xf32>
    %7 = vector.shape_cast %6 : vector<1x8x32xf32> to vector<8x32xf32>
    %c0_2 = arith.constant 0 : index
    %c0_3 = arith.constant 0 : index
    %c0_4 = arith.constant 0 : index
    %8 = vector.load %arg2[%c0_2, %c0_3, %c0_4] : memref<1x1x8xf32, #tpu.memory_space<vmem>>, vector<1x1x8xf32>
    %9 = vector.shape_cast %8 : vector<1x1x8xf32> to vector<1x8xf32>
    %c0_5 = arith.constant 0 : index
    %c0_6 = arith.constant 0 : index
    %10 = vector.load %arg4[%c0_5, %c0_6] : memref<32x32xf32, #tpu.memory_space<vmem>>, vector<32x32xf32>
    %cst = arith.constant dense<0.000000e+00> : vector<8x32xf32>
    %11 = tpu.matmul %7, %10, %cst {dimension_numbers = #tpu.dot_dimension_numbers<[1], [0], [0], [1], [0, 0, 1, 1], [], []>} : vector<8x32xf32>, vector<32x32xf32>, vector<8x32xf32> -> vector<8x32xf32>
    %c0_7 = arith.constant 0 : index
    %c0_8 = arith.constant 0 : index
    %12 = vector.load %arg8[%c0_7, %c0_8] : memref<1x32xf32, #tpu.memory_space<vmem>>, vector<1x32xf32>
    %13 = vector.broadcast %12 : vector<1x32xf32> to vector<8x32xf32>
    %14 = arith.addf %11, %13 : vector<8x32xf32>
    %cst_9 = arith.constant 0.353553385 : f32
    %15 = vector.broadcast %cst_9 : f32 to vector<8x32xf32>
    %16 = arith.mulf %14, %15 : vector<8x32xf32>
    %17 = vector.extract_strided_slice %16 {offsets = [0, 0], sizes = [8, 8], strides = [1, 1]} : vector<8x32xf32> to vector<8x8xf32>
    %18 = vector.extract_strided_slice %16 {offsets = [0, 8], sizes = [8, 8], strides = [1, 1]} : vector<8x32xf32> to vector<8x8xf32>
    %19 = vector.extract_strided_slice %16 {offsets = [0, 16], sizes = [8, 8], strides = [1, 1]} : vector<8x32xf32> to vector<8x8xf32>
    %20 = vector.extract_strided_slice %16 {offsets = [0, 24], sizes = [8, 8], strides = [1, 1]} : vector<8x32xf32> to vector<8x8xf32>
    %21 = vector.shape_cast %17 : vector<8x8xf32> to vector<1x8x8xf32>
    %22 = vector.shape_cast %18 : vector<8x8xf32> to vector<1x8x8xf32>
    %23 = vector.shape_cast %19 : vector<8x8xf32> to vector<1x8x8xf32>
    %24 = vector.shape_cast %20 : vector<8x8xf32> to vector<1x8x8xf32>
    %25 = tpu.concatenate %21, %22, %23, %24 in 0 : vector<1x8x8xf32>, vector<1x8x8xf32>, vector<1x8x8xf32>, vector<1x8x8xf32> -> vector<4x8x8xf32>
    %c0_10 = arith.constant 0 : index
    %c0_11 = arith.constant 0 : index
    %c0_12 = arith.constant 0 : index
    %26 = vector.load %arg21[%c0_10, %c0_11, %c0_12] : memref<4x8x8xf32, #tpu.memory_space<vmem>>, vector<4x8x8xf32>
    %c0_13 = arith.constant 0 : index
    %c0_14 = arith.constant 0 : index
    %c0_15 = arith.constant 0 : index
    %27 = vector.load %arg22[%c0_13, %c0_14, %c0_15] : memref<4x8x8xf32, #tpu.memory_space<vmem>>, vector<4x8x8xf32>
    "tpu.trace_start"() <{level = 10 : i32, message = "hqd,hkd->hqk"}> : () -> ()
    %cst_16 = arith.constant dense<0.000000e+00> : vector<4x8x8xf32>
    %28 = tpu.matmul %25, %26, %cst_16 {dimension_numbers = #tpu.dot_dimension_numbers<[2], [2], [1], [1], [0, 0, 0, 1, 1, 1], [0], [0]>} : vector<4x8x8xf32>, vector<4x8x8xf32>, vector<4x8x8xf32> -> vector<4x8x8xf32>
    "tpu.trace_stop"() : () -> ()
    %29 = vector.shape_cast %9 : vector<1x8xf32> to vector<1x1x8xf32>
    %30 = vector.broadcast %29 : vector<1x1x8xf32> to vector<4x8x8xf32>
    %31 = arith.addf %28, %30 : vector<4x8x8xf32>
    %cst_17 = arith.constant dense<0xFF800000> : vector<4x8xf32>
    %32 = vector.multi_reduction <maximumf>, %31, %cst_17 [2] : vector<4x8x8xf32> to vector<4x8xf32>
    %33 = vector.shape_cast %32 : vector<4x8xf32> to vector<4x8x1xf32>
    %34 = vector.broadcast %33 : vector<4x8x1xf32> to vector<4x8x8xf32>
    %35 = arith.subf %31, %34 : vector<4x8x8xf32>
    %36 = math.exp %35 : vector<4x8x8xf32>
    %cst_18 = arith.constant dense<0.000000e+00> : vector<4x8xf32>
    %37 = vector.multi_reduction <add>, %36, %cst_18 [2] : vector<4x8x8xf32> to vector<4x8xf32>
    %38 = vector.shape_cast %37 : vector<4x8xf32> to vector<4x8x1xf32>
    %39 = tpu.reciprocal %38 {approx = true} : vector<4x8x1xf32> -> vector<4x8x1xf32>
    %40 = vector.broadcast %39 : vector<4x8x1xf32> to vector<4x8x8xf32>
    %41 = arith.mulf %36, %40 : vector<4x8x8xf32>
    "tpu.trace_start"() <{level = 10 : i32, message = "hqk,hkd->hqd"}> : () -> ()
    %cst_19 = arith.constant dense<0.000000e+00> : vector<4x8x8xf32>
    %42 = tpu.matmul %41, %27, %cst_19 {dimension_numbers = #tpu.dot_dimension_numbers<[2], [1], [1], [2], [0, 0, 0, 1, 1, 2], [0], [0]>} : vector<4x8x8xf32>, vector<4x8x8xf32>, vector<4x8x8xf32> -> vector<4x8x8xf32>
    "tpu.trace_stop"() : () -> ()
    %43 = vector.extract_strided_slice %42 {offsets = [0, 0, 0], sizes = [1, 8, 8], strides = [1, 1, 1]} : vector<4x8x8xf32> to vector<1x8x8xf32>
    %44 = vector.shape_cast %43 : vector<1x8x8xf32> to vector<8x8xf32>
    %45 = vector.extract_strided_slice %42 {offsets = [1, 0, 0], sizes = [1, 8, 8], strides = [1, 1, 1]} : vector<4x8x8xf32> to vector<1x8x8xf32>
    %46 = vector.shape_cast %45 : vector<1x8x8xf32> to vector<8x8xf32>
    %47 = vector.extract_strided_slice %42 {offsets = [2, 0, 0], sizes = [1, 8, 8], strides = [1, 1, 1]} : vector<4x8x8xf32> to vector<1x8x8xf32>
    %48 = vector.shape_cast %47 : vector<1x8x8xf32> to vector<8x8xf32>
    %49 = vector.extract_strided_slice %42 {offsets = [3, 0, 0], sizes = [1, 8, 8], strides = [1, 1, 1]} : vector<4x8x8xf32> to vector<1x8x8xf32>
    %50 = vector.shape_cast %49 : vector<1x8x8xf32> to vector<8x8xf32>
    %51 = tpu.concatenate %44, %46, %48, %50 in 1 : vector<8x8xf32>, vector<8x8xf32>, vector<8x8xf32>, vector<8x8xf32> -> vector<8x32xf32>
    %c0_20 = arith.constant 0 : index
    %c0_21 = arith.constant 0 : index
    %52 = vector.load %arg7[%c0_20, %c0_21] : memref<32x32xf32, #tpu.memory_space<vmem>>, vector<32x32xf32>
    %cst_22 = arith.constant dense<0.000000e+00> : vector<8x32xf32>
    %53 = tpu.matmul %51, %52, %cst_22 {dimension_numbers = #tpu.dot_dimension_numbers<[1], [0], [0], [1], [0, 0, 1, 1], [], []>} : vector<8x32xf32>, vector<32x32xf32>, vector<8x32xf32> -> vector<8x32xf32>
    %c0_23 = arith.constant 0 : index
    %c0_24 = arith.constant 0 : index
    %54 = vector.load %arg11[%c0_23, %c0_24] : memref<1x32xf32, #tpu.memory_space<vmem>>, vector<1x32xf32>
    %55 = vector.broadcast %54 : vector<1x32xf32> to vector<8x32xf32>
    %56 = arith.addf %53, %55 : vector<8x32xf32>
    %57 = arith.addf %7, %56 : vector<8x32xf32>
    %c0_25 = arith.constant 0 : index
    %c0_26 = arith.constant 0 : index
    %58 = vector.load %arg16[%c0_25, %c0_26] : memref<1x32xf32, #tpu.memory_space<vmem>>, vector<1x32xf32>
    %c0_27 = arith.constant 0 : index
    %c0_28 = arith.constant 0 : index
    %59 = vector.load %arg17[%c0_27, %c0_28] : memref<1x32xf32, #tpu.memory_space<vmem>>, vector<1x32xf32>
    %cst_29 = arith.constant dense<0.000000e+00> : vector<8xf32>
    %60 = vector.multi_reduction <add>, %57, %cst_29 [1] : vector<8x32xf32> to vector<8xf32>
    %61 = vector.shape_cast %60 : vector<8xf32> to vector<8x1xf32>
    %62 = arith.mulf %57, %57 : vector<8x32xf32>
    %cst_30 = arith.constant dense<0.000000e+00> : vector<8xf32>
    %63 = vector.multi_reduction <add>, %62, %cst_30 [1] : vector<8x32xf32> to vector<8xf32>
    %64 = vector.shape_cast %63 : vector<8xf32> to vector<8x1xf32>
    %cst_31 = arith.constant 3.125000e-02 : f32
    %65 = vector.broadcast %cst_31 : f32 to vector<8x1xf32>
    %66 = arith.mulf %61, %65 : vector<8x1xf32>
    %cst_32 = arith.constant 3.125000e-02 : f32
    %67 = vector.broadcast %cst_32 : f32 to vector<8x1xf32>
    %68 = arith.mulf %64, %67 : vector<8x1xf32>
    %69 = arith.mulf %66, %66 : vector<8x1xf32>
    %70 = arith.subf %68, %69 : vector<8x1xf32>
    %cst_33 = arith.constant 0.000000e+00 : f32
    %71 = vector.broadcast %cst_33 : f32 to vector<8x1xf32>
    %72 = arith.maximumf %70, %71 : vector<8x1xf32>
    %73 = vector.broadcast %66 : vector<8x1xf32> to vector<8x32xf32>
    %74 = arith.subf %57, %73 : vector<8x32xf32>
    %cst_34 = arith.constant 9.99999974E-6 : f32
    %75 = vector.broadcast %cst_34 : f32 to vector<8x1xf32>
    %76 = arith.addf %72, %75 : vector<8x1xf32>
    %77 = math.rsqrt %76 : vector<8x1xf32>
    %78 = vector.broadcast %77 : vector<8x1xf32> to vector<8x32xf32>
    %79 = arith.mulf %74, %78 : vector<8x32xf32>
    %80 = vector.broadcast %58 : vector<1x32xf32> to vector<8x32xf32>
    %81 = arith.mulf %79, %80 : vector<8x32xf32>
    %82 = vector.broadcast %59 : vector<1x32xf32> to vector<8x32xf32>
    %83 = arith.addf %81, %82 : vector<8x32xf32>
    %c0_35 = arith.constant 0 : index
    %c0_36 = arith.constant 0 : index
    %84 = vector.load %arg12[%c0_35, %c0_36] : memref<32x64xf32, #tpu.memory_space<vmem>>, vector<32x64xf32>
    %cst_37 = arith.constant dense<0.000000e+00> : vector<8x64xf32>
    %85 = tpu.matmul %83, %84, %cst_37 {dimension_numbers = #tpu.dot_dimension_numbers<[1], [0], [0], [1], [0, 0, 1, 1], [], []>} : vector<8x32xf32>, vector<32x64xf32>, vector<8x64xf32> -> vector<8x64xf32>
    %c0_38 = arith.constant 0 : index
    %c0_39 = arith.constant 0 : index
    %86 = vector.load %arg13[%c0_38, %c0_39] : memref<1x64xf32, #tpu.memory_space<vmem>>, vector<1x64xf32>
    %87 = vector.broadcast %86 : vector<1x64xf32> to vector<8x64xf32>
    %88 = arith.addf %85, %87 : vector<8x64xf32>
    %cst_40 = arith.constant 0.000000e+00 : f32
    %89 = vector.broadcast %cst_40 : f32 to vector<8x64xf32>
    %90 = arith.maximumf %88, %89 : vector<8x64xf32>
    %c0_41 = arith.constant 0 : index
    %c0_42 = arith.constant 0 : index
    %91 = vector.load %arg14[%c0_41, %c0_42] : memref<64x32xf32, #tpu.memory_space<vmem>>, vector<64x32xf32>
    %cst_43 = arith.constant dense<0.000000e+00> : vector<8x32xf32>
    %92 = tpu.matmul %90, %91, %cst_43 {dimension_numbers = #tpu.dot_dimension_numbers<[1], [0], [0], [1], [0, 0, 1, 1], [], []>} : vector<8x64xf32>, vector<64x32xf32>, vector<8x32xf32> -> vector<8x32xf32>
    %c0_44 = arith.constant 0 : index
    %c0_45 = arith.constant 0 : index
    %93 = vector.load %arg15[%c0_44, %c0_45] : memref<1x32xf32, #tpu.memory_space<vmem>>, vector<1x32xf32>
    %94 = vector.broadcast %93 : vector<1x32xf32> to vector<8x32xf32>
    %95 = arith.addf %92, %94 : vector<8x32xf32>
    %96 = arith.addf %83, %95 : vector<8x32xf32>
    %c0_46 = arith.constant 0 : index
    %c0_47 = arith.constant 0 : index
    %97 = vector.load %arg18[%c0_46, %c0_47] : memref<1x32xf32, #tpu.memory_space<vmem>>, vector<1x32xf32>
    %c0_48 = arith.constant 0 : index
    %c0_49 = arith.constant 0 : index
    %98 = vector.load %arg19[%c0_48, %c0_49] : memref<1x32xf32, #tpu.memory_space<vmem>>, vector<1x32xf32>
    %cst_50 = arith.constant dense<0.000000e+00> : vector<8xf32>
    %99 = vector.multi_reduction <add>, %96, %cst_50 [1] : vector<8x32xf32> to vector<8xf32>
    %100 = vector.shape_cast %99 : vector<8xf32> to vector<8x1xf32>
    %101 = arith.mulf %96, %96 : vector<8x32xf32>
    %cst_51 = arith.constant dense<0.000000e+00> : vector<8xf32>
    %102 = vector.multi_reduction <add>, %101, %cst_51 [1] : vector<8x32xf32> to vector<8xf32>
    %103 = vector.shape_cast %102 : vector<8xf32> to vector<8x1xf32>
    %cst_52 = arith.constant 3.125000e-02 : f32
    %104 = vector.broadcast %cst_52 : f32 to vector<8x1xf32>
    %105 = arith.mulf %100, %104 : vector<8x1xf32>
    %cst_53 = arith.constant 3.125000e-02 : f32
    %106 = vector.broadcast %cst_53 : f32 to vector<8x1xf32>
    %107 = arith.mulf %103, %106 : vector<8x1xf32>
    %108 = arith.mulf %105, %105 : vector<8x1xf32>
    %109 = arith.subf %107, %108 : vector<8x1xf32>
    %cst_54 = arith.constant 0.000000e+00 : f32
    %110 = vector.broadcast %cst_54 : f32 to vector<8x1xf32>
    %111 = arith.maximumf %109, %110 : vector<8x1xf32>
    %112 = vector.broadcast %105 : vector<8x1xf32> to vector<8x32xf32>
    %113 = arith.subf %96, %112 : vector<8x32xf32>
    %cst_55 = arith.constant 9.99999974E-6 : f32
    %114 = vector.broadcast %cst_55 : f32 to vector<8x1xf32>
    %115 = arith.addf %111, %114 : vector<8x1xf32>
    %116 = math.rsqrt %115 : vector<8x1xf32>
    %117 = vector.broadcast %116 : vector<8x1xf32> to vector<8x32xf32>
    %118 = arith.mulf %113, %117 : vector<8x32xf32>
    %119 = vector.broadcast %97 : vector<1x32xf32> to vector<8x32xf32>
    %120 = arith.mulf %118, %119 : vector<8x32xf32>
    %121 = vector.broadcast %98 : vector<1x32xf32> to vector<8x32xf32>
    %122 = arith.addf %120, %121 : vector<8x32xf32>
    %c0_56 = arith.constant 0 : index
    %c0_57 = arith.constant 0 : index
    %c0_58 = arith.constant 0 : index
    %123 = vector.load %arg20[%c0_56, %c0_57, %c0_58] : memref<1x8x32xf32, #tpu.memory_space<vmem>>, vector<1x8x32xf32>
    %124 = vector.shape_cast %123 : vector<1x8x32xf32> to vector<8x32xf32>
    %125 = vector.shape_cast %122 : vector<8x32xf32> to vector<1x8x32xf32>
    tpu.vector_store %arg20[%c0_56, %c0_57, %c0_58], %125 {strides = array<i32>} : memref<1x8x32xf32, #tpu.memory_space<vmem>>, vector<1x8x32xf32>,
    return
  }
  func.func @transform_0(%arg0: i32, %arg1: i32) -> (i32, i32, i32) {
    %c0_i32 = arith.constant 0 : i32
    %c0_i32_0 = arith.constant 0 : i32
    %c0_i32_1 = arith.constant 0 : i32
    return %arg0, %c0_i32, %c0_i32_0 : i32, i32, i32
  }
  func.func @transform_1(%arg0: i32, %arg1: i32) -> (i32, i32, i32) {
    %c0_i32 = arith.constant 0 : i32
    %c0_i32_0 = arith.constant 0 : i32
    %c0_i32_1 = arith.constant 0 : i32
    return %arg0, %c0_i32, %c0_i32_0 : i32, i32, i32
  }
  func.func @transform_2(%arg0: i32, %arg1: i32) -> (i32, i32) {
    %c0_i32 = arith.constant 0 : i32
    %c0_i32_0 = arith.constant 0 : i32
    %c0_i32_1 = arith.constant 0 : i32
    return %c0_i32, %c0_i32_0 : i32, i32
  }
  func.func @transform_3(%arg0: i32, %arg1: i32) -> (i32, i32) {
    %c0_i32 = arith.constant 0 : i32
    %c0_i32_0 = arith.constant 0 : i32
    %c0_i32_1 = arith.constant 0 : i32
    return %c0_i32, %c0_i32_0 : i32, i32
  }
  func.func @transform_4(%arg0: i32, %arg1: i32) -> (i32, i32) {
    %c0_i32 = arith.constant 0 : i32
    %c0_i32_0 = arith.constant 0 : i32
    %c0_i32_1 = arith.constant 0 : i32
    return %c0_i32, %c0_i32_0 : i32, i32
  }
  func.func @transform_5(%arg0: i32, %arg1: i32) -> (i32, i32) {
    %c0_i32 = arith.constant 0 : i32
    %c0_i32_0 = arith.constant 0 : i32
    %c0_i32_1 = arith.constant 0 : i32
    return %c0_i32, %c0_i32_0 : i32, i32
  }
  func.func @transform_6(%arg0: i32, %arg1: i32) -> (i32, i32) {
    %c0_i32 = arith.constant 0 : i32
    %c0_i32_0 = arith.constant 0 : i32
    %c0_i32_1 = arith.constant 0 : i32
    return %c0_i32, %c0_i32_0 : i32, i32
  }
  func.func @transform_7(%arg0: i32, %arg1: i32) -> (i32, i32) {
    %c0_i32 = arith.constant 0 : i32
    %c0_i32_0 = arith.constant 0 : i32
    %c0_i32_1 = arith.constant 0 : i32
    return %c0_i32, %c0_i32_0 : i32, i32
  }
  func.func @transform_8(%arg0: i32, %arg1: i32) -> (i32, i32) {
    %c0_i32 = arith.constant 0 : i32
    %c0_i32_0 = arith.constant 0 : i32
    %c0_i32_1 = arith.constant 0 : i32
    return %c0_i32, %c0_i32_0 : i32, i32
  }
  func.func @transform_9(%arg0: i32, %arg1: i32) -> (i32, i32) {
    %c0_i32 = arith.constant 0 : i32
    %c0_i32_0 = arith.constant 0 : i32
    %c0_i32_1 = arith.constant 0 : i32
    return %c0_i32, %c0_i32_0 : i32, i32
  }
  func.func @transform_10(%arg0: i32, %arg1: i32) -> (i32, i32) {
    %c0_i32 = arith.constant 0 : i32
    %c0_i32_0 = arith.constant 0 : i32
    %c0_i32_1 = arith.constant 0 : i32
    return %c0_i32, %c0_i32_0 : i32, i32
  }
  func.func @transform_11(%arg0: i32, %arg1: i32) -> (i32, i32) {
    %c0_i32 = arith.constant 0 : i32
    %c0_i32_0 = arith.constant 0 : i32
    %c0_i32_1 = arith.constant 0 : i32
    return %c0_i32, %c0_i32_0 : i32, i32
  }
  func.func @transform_12(%arg0: i32, %arg1: i32) -> (i32, i32) {
    %c0_i32 = arith.constant 0 : i32
    %c0_i32_0 = arith.constant 0 : i32
    %c0_i32_1 = arith.constant 0 : i32
    return %c0_i32, %c0_i32_0 : i32, i32
  }
  func.func @transform_13(%arg0: i32, %arg1: i32) -> (i32, i32) {
    %c0_i32 = arith.constant 0 : i32
    %c0_i32_0 = arith.constant 0 : i32
    %c0_i32_1 = arith.constant 0 : i32
    return %c0_i32, %c0_i32_0 : i32, i32
  }
  func.func @transform_14(%arg0: i32, %arg1: i32) -> (i32, i32) {
    %c0_i32 = arith.constant 0 : i32
    %c0_i32_0 = arith.constant 0 : i32
    %c0_i32_1 = arith.constant 0 : i32
    return %c0_i32, %c0_i32_0 : i32, i32
  }
  func.func @transform_15(%arg0: i32, %arg1: i32) -> (i32, i32) {
    %c0_i32 = arith.constant 0 : i32
    %c0_i32_0 = arith.constant 0 : i32
    %c0_i32_1 = arith.constant 0 : i32
    return %c0_i32, %c0_i32_0 : i32, i32
  }
  func.func @transform_16(%arg0: i32, %arg1: i32) -> (i32, i32) {
    %c0_i32 = arith.constant 0 : i32
    %c0_i32_0 = arith.constant 0 : i32
    %c0_i32_1 = arith.constant 0 : i32
    return %c0_i32, %c0_i32_0 : i32, i32
  }
  func.func @transform_17(%arg0: i32, %arg1: i32) -> (i32, i32) {
    %c0_i32 = arith.constant 0 : i32
    %c0_i32_0 = arith.constant 0 : i32
    %c0_i32_1 = arith.constant 0 : i32
    return %c0_i32, %c0_i32_0 : i32, i32
  }
  func.func @transform_18(%arg0: i32, %arg1: i32) -> (i32, i32, i32) {
    %c0_i32 = arith.constant 0 : i32
    %c0_i32_0 = arith.constant 0 : i32
    return %arg0, %arg1, %c0_i32 : i32, i32, i32
  }
}

</mosaic_0001>

<llo_original>
// kernel: tpu_custom_call.1
$region0: #{tpu_custom_call.1}
  #allocation0 [shape = 'u32[]', space=smem, size = 0x4, offset = 0x4, fixed_abs, tag = 'smem constant byte address 0x4 - core index']
  #allocation1 [shape = 'u32[72,128]{1,0:T(1,128)}', space=vmem, size = 0x9000, scoped, tag = 'internal scratch']
  #allocation2 [shape = 'f32[4,8,8]{2,1,0:T(8,128)}', space=vmem, size = 0x4000, scoped, tag = 'scratch operand']
  #allocation3 [shape = 'f32[4,8,8]{2,1,0:T(8,128)}', space=vmem, size = 0x4000, scoped, tag = 'scratch operand']
  %s0 = inlined_call_operand.hbm [shape: f32[2,1,8], index: 0, kind: input, shape index: {}]
  %s1 = inlined_call_operand.hbm [shape: f32[2,8,32], index: 1, kind: input, shape index: {}]
  %s2 = inlined_call_operand.vmem [shape: f32[32,32], index: 2, kind: input, shape index: {}]
  %s3 = inlined_call_operand.vmem [shape: f32[32,32], index: 3, kind: input, shape index: {}]
  %s4 = inlined_call_operand.vmem [shape: f32[32,32], index: 4, kind: input, shape index: {}]
  %s5 = inlined_call_operand.hbm [shape: f32[32,32], index: 5, kind: input, shape index: {}]
  %s6 = inlined_call_operand.vmem [shape: f32[1,32], index: 6, kind: input, shape index: {}]
  %s7 = inlined_call_operand.vmem [shape: f32[1,32], index: 7, kind: input, shape index: {}]
  %s8 = inlined_call_operand.vmem [shape: f32[1,32], index: 8, kind: input, shape index: {}]
  %s9 = inlined_call_operand.vmem [shape: f32[1,32], index: 9, kind: input, shape index: {}]
  %s10 = inlined_call_operand.hbm [shape: f32[32,64], index: 10, kind: input, shape index: {}]
  %s11 = inlined_call_operand.vmem [shape: f32[1,64], index: 11, kind: input, shape index: {}]
  %s12 = inlined_call_operand.vmem [shape: f32[64,32], index: 12, kind: input, shape index: {}]
  %s13 = inlined_call_operand.vmem [shape: f32[1,32], index: 13, kind: input, shape index: {}]
  %s14 = inlined_call_operand.vmem [shape: f32[1,32], index: 14, kind: input, shape index: {}]
  %s15 = inlined_call_operand.vmem [shape: f32[1,32], index: 15, kind: input, shape index: {}]
  %s16 = inlined_call_operand.vmem [shape: f32[1,32], index: 16, kind: input, shape index: {}]
  %s17 = inlined_call_operand.vmem [shape: f32[1,32], index: 17, kind: input, shape index: {}]
  %s18 = inlined_call_operand.hbm [shape: f32[2,8,32], index: 18, kind: output, shape index: {}]
  %s19 = sld [smem:[#allocation0]]
  $region125: #{tpu_custom_call.1} parent=0
    _
  %s21 = ssub.s32 1, %s19
  %s22 = scalar_select 0, %s21, %s19
  $region1: #{tpu_custom_call.1} parent=0
    #allocation4 [shape = 'u8[1024]{0}', space=vmem, size = 0x400, scoped, tag = 'input window, operand 0']
    #allocation5 [shape = 's32[2]{0}', space=sflag, size = 0x8, scoped, tag = 'scoped memory for tpu_custom_call.1']
    #allocation6 [shape = 's32[2]{0}', space=sflag, size = 0x8, scoped, tag = 'scoped memory for tpu_custom_call.1']
    #allocation7 [shape = 'u8[8192]{0}', space=vmem, size = 0x2000, scoped, tag = 'input window, operand 1']
    #allocation8 [shape = 's32[2]{0}', space=sflag, size = 0x8, scoped, tag = 'scoped memory for tpu_custom_call.1']
    #allocation9 [shape = 'u8[16384]{0}', space=vmem, size = 0x4000, scoped, tag = 'input window, operand 5, single buffered']
    #allocation10 [shape = 'u8[16384]{0}', space=vmem, size = 0x4000, scoped, tag = 'input window, operand 10, single buffered']
    #allocation11 [shape = 's32[1]{0}', space=sflag, size = 0x4, scoped, tag = 'scoped memory for tpu_custom_call.1']
    #allocation12 [shape = 'u8[8192]{0}', space=vmem, size = 0x2000, scoped, tag = 'output window, operand 0']
    %23 = vsyncpa [#allocation5], 0
    %s24 = scalar_lea.sflag [#allocation5], 1
    %25 = vsyncpa %s24, 0
    %26 = vsyncpa [#allocation8], 0
    %s27 = scalar_lea.sflag [#allocation8], 1
    %28 = vsyncpa %s27, 0
    %29 = vsyncpa [#allocation11], 0
    %30 = vsyncpa [#allocation6], 0
    %s31 = scalar_lea.sflag [#allocation6], 1
    %32 = vsyncpa %s31, 0
    loop: start=0, step=1, limit=4
    $region2: #{tpu_custom_call.1} parent=1 // loop_pre_header
      _
    $region3: #{tpu_custom_call.1} parent=1 // loop_header
      %s34 = sphi 0, %s38
      %p35 = scmp.ge.s32.totalorder %s34, 4
      %s41 = sphi 0, %s53
      %s42 = sphi 0, %s49
      %s43 = sphi 0, %s41
      %s44 = sphi 0, %s42
      %s45 = sphi 0, %s43
      %s46 = sphi 0, %s44
      %s56 = sphi 0, %s58
      %s59 = sphi 0, %s56
      %s60 = sphi 0, %s59
      %s76 = sphi 0, %s60
      %s82 = sphi 0, %s84
      %s85 = sphi 0, %s82
      %s86 = sphi 0, %s85
      %s102 = sphi 0, %s86
      %s106 = sphi 0, %s106
      %s108 = sphi 0, %s106
      %s109 = sphi 0, %s108
      %s123 = sphi 0, %s109
      %s127 = sphi 0, %s127
      %s129 = sphi 0, %s127
      %s130 = sphi 0, %s129
      %s144 = sphi 0, %s130
      %s148 = sphi 0, %s148
      %s150 = sphi 0, %s148
      %s151 = sphi 0, %s150
      %s165 = sphi 0, %s151
      %s169 = sphi 0, %s169
      %s171 = sphi 0, %s169
      %s172 = sphi 0, %s171
      %s186 = sphi 0, %s172
      %s190 = sphi 0, %s190
      %s192 = sphi 0, %s190
      %s193 = sphi 0, %s192
      %s207 = sphi 0, %s193
      %s211 = sphi 0, %s211
      %s213 = sphi 0, %s211
      %s214 = sphi 0, %s213
      %s228 = sphi 0, %s214
      %s232 = sphi 0, %s232
      %s234 = sphi 0, %s232
      %s235 = sphi 0, %s234
      %s249 = sphi 0, %s235
      %s253 = sphi 0, %s253
      %s255 = sphi 0, %s253
      %s256 = sphi 0, %s255
      %s270 = sphi 0, %s256
      %s274 = sphi 0, %s274
      %s276 = sphi 0, %s274
      %s277 = sphi 0, %s276
      %s291 = sphi 0, %s277
      %s295 = sphi 0, %s295
      %s297 = sphi 0, %s295
      %s298 = sphi 0, %s297
      %s312 = sphi 0, %s298
      %s316 = sphi 0, %s316
      %s318 = sphi 0, %s316
      %s319 = sphi 0, %s318
      %s333 = sphi 0, %s319
      %s337 = sphi 0, %s337
      %s339 = sphi 0, %s337
      %s340 = sphi 0, %s339
      %s354 = sphi 0, %s340
      %s358 = sphi 0, %s358
      %s360 = sphi 0, %s358
      %s361 = sphi 0, %s360
      %s375 = sphi 0, %s361
      %s379 = sphi 0, %s379
      %s381 = sphi 0, %s379
      %s382 = sphi 0, %s381
      %s396 = sphi 0, %s382
      %s400 = sphi 0, %s400
      %s402 = sphi 0, %s400
      %s403 = sphi 0, %s402
      %s417 = sphi 0, %s403
      %s421 = sphi 0, %s421
      %s423 = sphi 0, %s421
      %s424 = sphi 0, %s423
      %s438 = sphi 0, %s424
      %s446 = sphi 0, %s448
      %s449 = sphi 0, %s446
      %s450 = sphi 0, %s449
      %s466 = sphi 0, %s450
    $region4: #{tpu_custom_call.1} parent=1 // loop_header_branch
      %37 = sbr.rel (%p35) target = $region8
    $region5: #{tpu_custom_call.1} parent=1 // loop_body
      %s39 = ssub.s32 %s34, 1
      %s40 = ssub.s32 %s34, 2
      %s47 = sadd.s32 1, %s42
      %p48 = scmp.ge.s32.totalorder %s47, 1
      %s49 = scalar_select %p48, 0, %s47
      %s50 = sadd.s32 1, %s41
      %s51 = scalar_select %p48, %s50, %s41
      %p52 = scmp.ge.s32.totalorder %s51, 2
      %s53 = scalar_select %p52, 0, %s51
      %s54 = ssub.s32 %s41, %s53
      %p55 = scmp.eq.s32.totalorder %s54, 0
      %s57 = sadd.s32 %s56, 1
      %s58 = scalar_select %p55, %s56, %s57
      %p61 = pneg %p55
      %p62 = scmp.eq.s32.totalorder %s34, 1
      %p63 = por %p61, %p62
      %p64 = scmp.ne.s32.totalorder %s56, %s59
      %p65 = scmp.eq.s32.totalorder %s34, 0
      %p66 = por %p64, %p65
      %p67 = scmp.ne.s32.totalorder %s56, %s59
      %p68 = scmp.eq.s32.totalorder %s39, 1
      %p69 = por %p67, %p68
      %p70 = scmp.ne.s32.totalorder %s59, %s60
      %p71 = scmp.eq.s32.totalorder %s39, 0
      %p72 = por %p70, %p71
      %p73 = scmp.ne.s32.totalorder %s59, %s60
      %p74 = scmp.eq.s32.totalorder %s40, 1
      %p75 = por %p73, %p74
      %p77 = scmp.ne.s32.totalorder %s60, %s76
      %p78 = scmp.eq.s32.totalorder %s40, 0
      %p79 = por %p77, %p78
      %s80 = ssub.s32 %s41, %s53
      %p81 = scmp.eq.s32.totalorder %s80, 0
      %s83 = sadd.s32 %s82, 1
      %s84 = scalar_select %p81, %s82, %s83
      %p87 = pneg %p81
      %p88 = scmp.eq.s32.totalorder %s34, 1
      %p89 = por %p87, %p88
      %p90 = scmp.ne.s32.totalorder %s82, %s85
      %p91 = scmp.eq.s32.totalorder %s34, 0
      %p92 = por %p90, %p91
      %p93 = scmp.ne.s32.totalorder %s82, %s85
      %p94 = scmp.eq.s32.totalorder %s39, 1
      %p95 = por %p93, %p94
      %p96 = scmp.ne.s32.totalorder %s85, %s86
      %p97 = scmp.eq.s32.totalorder %s39, 0
      %p98 = por %p96, %p97
      %p99 = scmp.ne.s32.totalorder %s85, %s86
      %p100 = scmp.eq.s32.totalorder %s40, 1
      %p101 = por %p99, %p100
      %p103 = scmp.ne.s32.totalorder %s86, %s102
      %p104 = scmp.eq.s32.totalorder %s40, 0
      %p105 = por %p103, %p104
      %s107 = sadd.s32 %s106, 1
      %p110 = scmp.eq.s32.totalorder %s34, 1
      %p111 = scmp.ne.s32.totalorder %s106, %s108
      %p112 = scmp.eq.s32.totalorder %s34, 0
      %p113 = por %p111, %p112
      %p114 = scmp.ne.s32.totalorder %s106, %s108
      %p115 = scmp.eq.s32.totalorder %s39, 1
      %p116 = por %p114, %p115
      %p117 = scmp.ne.s32.totalorder %s108, %s109
      %p118 = scmp.eq.s32.totalorder %s39, 0
      %p119 = por %p117, %p118
      %p120 = scmp.ne.s32.totalorder %s108, %s109
      %p121 = scmp.eq.s32.totalorder %s40, 1
      %p122 = por %p120, %p121
      %p124 = scmp.ne.s32.totalorder %s109, %s123
      %p125 = scmp.eq.s32.totalorder %s40, 0
      %p126 = por %p124, %p125
      %s128 = sadd.s32 %s127, 1
      %p131 = scmp.eq.s32.totalorder %s34, 1
      %p132 = scmp.ne.s32.totalorder %s127, %s129
      %p133 = scmp.eq.s32.totalorder %s34, 0
      %p134 = por %p132, %p133
      %p135 = scmp.ne.s32.totalorder %s127, %s129
      %p136 = scmp.eq.s32.totalorder %s39, 1
      %p137 = por %p135, %p136
      %p138 = scmp.ne.s32.totalorder %s129, %s130
      %p139 = scmp.eq.s32.totalorder %s39, 0
      %p140 = por %p138, %p139
      %p141 = scmp.ne.s32.totalorder %s129, %s130
      %p142 = scmp.eq.s32.totalorder %s40, 1
      %p143 = por %p141, %p142
      %p145 = scmp.ne.s32.totalorder %s130, %s144
      %p146 = scmp.eq.s32.totalorder %s40, 0
      %p147 = por %p145, %p146
      %s149 = sadd.s32 %s148, 1
      %p152 = scmp.eq.s32.totalorder %s34, 1
      %p153 = scmp.ne.s32.totalorder %s148, %s150
      %p154 = scmp.eq.s32.totalorder %s34, 0
      %p155 = por %p153, %p154
      %p156 = scmp.ne.s32.totalorder %s148, %s150
      %p157 = scmp.eq.s32.totalorder %s39, 1
      %p158 = por %p156, %p157
      %p159 = scmp.ne.s32.totalorder %s150, %s151
      %p160 = scmp.eq.s32.totalorder %s39, 0
      %p161 = por %p159, %p160
      %p162 = scmp.ne.s32.totalorder %s150, %s151
      %p163 = scmp.eq.s32.totalorder %s40, 1
      %p164 = por %p162, %p163
      %p166 = scmp.ne.s32.totalorder %s151, %s165
      %p167 = scmp.eq.s32.totalorder %s40, 0
      %p168 = por %p166, %p167
      %s170 = sadd.s32 %s169, 1
      %p173 = scmp.eq.s32.totalorder %s34, 1
      %p174 = scmp.ne.s32.totalorder %s169, %s171
      %p175 = scmp.eq.s32.totalorder %s34, 0
      %p176 = por %p174, %p175
      %p177 = scmp.ne.s32.totalorder %s169, %s171
      %p178 = scmp.eq.s32.totalorder %s39, 1
      %p179 = por %p177, %p178
      %p180 = scmp.ne.s32.totalorder %s171, %s172
      %p181 = scmp.eq.s32.totalorder %s39, 0
      %p182 = por %p180, %p181
      %p183 = scmp.ne.s32.totalorder %s171, %s172
      %p184 = scmp.eq.s32.totalorder %s40, 1
      %p185 = por %p183, %p184
      %p187 = scmp.ne.s32.totalorder %s172, %s186
      %p188 = scmp.eq.s32.totalorder %s40, 0
      %p189 = por %p187, %p188
      %s191 = sadd.s32 %s190, 1
      %p194 = scmp.eq.s32.totalorder %s34, 1
      %p195 = scmp.ne.s32.totalorder %s190, %s192
      %p196 = scmp.eq.s32.totalorder %s34, 0
      %p197 = por %p195, %p196
      %p198 = scmp.ne.s32.totalorder %s190, %s192
      %p199 = scmp.eq.s32.totalorder %s39, 1
      %p200 = por %p198, %p199
      %p201 = scmp.ne.s32.totalorder %s192, %s193
      %p202 = scmp.eq.s32.totalorder %s39, 0
      %p203 = por %p201, %p202
      %p204 = scmp.ne.s32.totalorder %s192, %s193
      %p205 = scmp.eq.s32.totalorder %s40, 1
      %p206 = por %p204, %p205
      %p208 = scmp.ne.s32.totalorder %s193, %s207
      %p209 = scmp.eq.s32.totalorder %s40, 0
      %p210 = por %p208, %p209
      %s212 = sadd.s32 %s211, 1
      %p215 = scmp.eq.s32.totalorder %s34, 1
      %p216 = scmp.ne.s32.totalorder %s211, %s213
      %p217 = scmp.eq.s32.totalorder %s34, 0
      %p218 = por %p216, %p217
      %p219 = scmp.ne.s32.totalorder %s211, %s213
      %p220 = scmp.eq.s32.totalorder %s39, 1
      %p221 = por %p219, %p220
      %p222 = scmp.ne.s32.totalorder %s213, %s214
      %p223 = scmp.eq.s32.totalorder %s39, 0
      %p224 = por %p222, %p223
      %p225 = scmp.ne.s32.totalorder %s213, %s214
      %p226 = scmp.eq.s32.totalorder %s40, 1
      %p227 = por %p225, %p226
      %p229 = scmp.ne.s32.totalorder %s214, %s228
      %p230 = scmp.eq.s32.totalorder %s40, 0
      %p231 = por %p229, %p230
      %s233 = sadd.s32 %s232, 1
      %p236 = scmp.eq.s32.totalorder %s34, 1
      %p237 = scmp.ne.s32.totalorder %s232, %s234
      %p238 = scmp.eq.s32.totalorder %s34, 0
      %p239 = por %p237, %p238
      %p240 = scmp.ne.s32.totalorder %s232, %s234
      %p241 = scmp.eq.s32.totalorder %s39, 1
      %p242 = por %p240, %p241
      %p243 = scmp.ne.s32.totalorder %s234, %s235
      %p244 = scmp.eq.s32.totalorder %s39, 0
      %p245 = por %p243, %p244
      %p246 = scmp.ne.s32.totalorder %s234, %s235
      %p247 = scmp.eq.s32.totalorder %s40, 1
      %p248 = por %p246, %p247
      %p250 = scmp.ne.s32.totalorder %s235, %s249
      %p251 = scmp.eq.s32.totalorder %s40, 0
      %p252 = por %p250, %p251
      %s254 = sadd.s32 %s253, 1
      %p257 = scmp.eq.s32.totalorder %s34, 1
      %p258 = scmp.ne.s32.totalorder %s253, %s255
      %p259 = scmp.eq.s32.totalorder %s34, 0
      %p260 = por %p258, %p259
      %p261 = scmp.ne.s32.totalorder %s253, %s255
      %p262 = scmp.eq.s32.totalorder %s39, 1
      %p263 = por %p261, %p262
      %p264 = scmp.ne.s32.totalorder %s255, %s256
      %p265 = scmp.eq.s32.totalorder %s39, 0
      %p266 = por %p264, %p265
      %p267 = scmp.ne.s32.totalorder %s255, %s256
      %p268 = scmp.eq.s32.totalorder %s40, 1
      %p269 = por %p267, %p268
      %p271 = scmp.ne.s32.totalorder %s256, %s270
      %p272 = scmp.eq.s32.totalorder %s40, 0
      %p273 = por %p271, %p272
      %s275 = sadd.s32 %s274, 1
      %p278 = scmp.eq.s32.totalorder %s34, 1
      %p279 = scmp.ne.s32.totalorder %s274, %s276
      %p280 = scmp.eq.s32.totalorder %s34, 0
      %p281 = por %p279, %p280
      %p282 = scmp.ne.s32.totalorder %s274, %s276
      %p283 = scmp.eq.s32.totalorder %s39, 1
      %p284 = por %p282, %p283
      %p285 = scmp.ne.s32.totalorder %s276, %s277
      %p286 = scmp.eq.s32.totalorder %s39, 0
      %p287 = por %p285, %p286
      %p288 = scmp.ne.s32.totalorder %s276, %s277
      %p289 = scmp.eq.s32.totalorder %s40, 1
      %p290 = por %p288, %p289
      %p292 = scmp.ne.s32.totalorder %s277, %s291
      %p293 = scmp.eq.s32.totalorder %s40, 0
      %p294 = por %p292, %p293
      %s296 = sadd.s32 %s295, 1
      %p299 = scmp.eq.s32.totalorder %s34, 1
      %p300 = scmp.ne.s32.totalorder %s295, %s297
      %p301 = scmp.eq.s32.totalorder %s34, 0
      %p302 = por %p300, %p301
      %p303 = scmp.ne.s32.totalorder %s295, %s297
      %p304 = scmp.eq.s32.totalorder %s39, 1
      %p305 = por %p303, %p304
      %p306 = scmp.ne.s32.totalorder %s297, %s298
      %p307 = scmp.eq.s32.totalorder %s39, 0
      %p308 = por %p306, %p307
      %p309 = scmp.ne.s32.totalorder %s297, %s298
      %p310 = scmp.eq.s32.totalorder %s40, 1
      %p311 = por %p309, %p310
      %p313 = scmp.ne.s32.totalorder %s298, %s312
      %p314 = scmp.eq.s32.totalorder %s40, 0
      %p315 = por %p313, %p314
      %s317 = sadd.s32 %s316, 1
      %p320 = scmp.eq.s32.totalorder %s34, 1
      %p321 = scmp.ne.s32.totalorder %s316, %s318
      %p322 = scmp.eq.s32.totalorder %s34, 0
      %p323 = por %p321, %p322
      %p324 = scmp.ne.s32.totalorder %s316, %s318
      %p325 = scmp.eq.s32.totalorder %s39, 1
      %p326 = por %p324, %p325
      %p327 = scmp.ne.s32.totalorder %s318, %s319
      %p328 = scmp.eq.s32.totalorder %s39, 0
      %p329 = por %p327, %p328
      %p330 = scmp.ne.s32.totalorder %s318, %s319
      %p331 = scmp.eq.s32.totalorder %s40, 1
      %p332 = por %p330, %p331
      %p334 = scmp.ne.s32.totalorder %s319, %s333
      %p335 = scmp.eq.s32.totalorder %s40, 0
      %p336 = por %p334, %p335
      %s338 = sadd.s32 %s337, 1
      %p341 = scmp.eq.s32.totalorder %s34, 1
      %p342 = scmp.ne.s32.totalorder %s337, %s339
      %p343 = scmp.eq.s32.totalorder %s34, 0
      %p344 = por %p342, %p343
      %p345 = scmp.ne.s32.totalorder %s337, %s339
      %p346 = scmp.eq.s32.totalorder %s39, 1
      %p347 = por %p345, %p346
      %p348 = scmp.ne.s32.totalorder %s339, %s340
      %p349 = scmp.eq.s32.totalorder %s39, 0
      %p350 = por %p348, %p349
      %p351 = scmp.ne.s32.totalorder %s339, %s340
      %p352 = scmp.eq.s32.totalorder %s40, 1
      %p353 = por %p351, %p352
      %p355 = scmp.ne.s32.totalorder %s340, %s354
      %p356 = scmp.eq.s32.totalorder %s40, 0
      %p357 = por %p355, %p356
      %s359 = sadd.s32 %s358, 1
      %p362 = scmp.eq.s32.totalorder %s34, 1
      %p363 = scmp.ne.s32.totalorder %s358, %s360
      %p364 = scmp.eq.s32.totalorder %s34, 0
      %p365 = por %p363, %p364
      %p366 = scmp.ne.s32.totalorder %s358, %s360
      %p367 = scmp.eq.s32.totalorder %s39, 1
      %p368 = por %p366, %p367
      %p369 = scmp.ne.s32.totalorder %s360, %s361
      %p370 = scmp.eq.s32.totalorder %s39, 0
      %p371 = por %p369, %p370
      %p372 = scmp.ne.s32.totalorder %s360, %s361
      %p373 = scmp.eq.s32.totalorder %s40, 1
      %p374 = por %p372, %p373
      %p376 = scmp.ne.s32.totalorder %s361, %s375
      %p377 = scmp.eq.s32.totalorder %s40, 0
      %p378 = por %p376, %p377
      %s380 = sadd.s32 %s379, 1
      %p383 = scmp.eq.s32.totalorder %s34, 1
      %p384 = scmp.ne.s32.totalorder %s379, %s381
      %p385 = scmp.eq.s32.totalorder %s34, 0
      %p386 = por %p384, %p385
      %p387 = scmp.ne.s32.totalorder %s379, %s381
      %p388 = scmp.eq.s32.totalorder %s39, 1
      %p389 = por %p387, %p388
      %p390 = scmp.ne.s32.totalorder %s381, %s382
      %p391 = scmp.eq.s32.totalorder %s39, 0
      %p392 = por %p390, %p391
      %p393 = scmp.ne.s32.totalorder %s381, %s382
      %p394 = scmp.eq.s32.totalorder %s40, 1
      %p395 = por %p393, %p394
      %p397 = scmp.ne.s32.totalorder %s382, %s396
      %p398 = scmp.eq.s32.totalorder %s40, 0
      %p399 = por %p397, %p398
      %s401 = sadd.s32 %s400, 1
      %p404 = scmp.eq.s32.totalorder %s34, 1
      %p405 = scmp.ne.s32.totalorder %s400, %s402
      %p406 = scmp.eq.s32.totalorder %s34, 0
      %p407 = por %p405, %p406
      %p408 = scmp.ne.s32.totalorder %s400, %s402
      %p409 = scmp.eq.s32.totalorder %s39, 1
      %p410 = por %p408, %p409
      %p411 = scmp.ne.s32.totalorder %s402, %s403
      %p412 = scmp.eq.s32.totalorder %s39, 0
      %p413 = por %p411, %p412
      %p414 = scmp.ne.s32.totalorder %s402, %s403
      %p415 = scmp.eq.s32.totalorder %s40, 1
      %p416 = por %p414, %p415
      %p418 = scmp.ne.s32.totalorder %s403, %s417
      %p419 = scmp.eq.s32.totalorder %s40, 0
      %p420 = por %p418, %p419
      %s422 = sadd.s32 %s421, 1
      %p425 = scmp.eq.s32.totalorder %s34, 1
      %p426 = scmp.ne.s32.totalorder %s421, %s423
      %p427 = scmp.eq.s32.totalorder %s34, 0
      %p428 = por %p426, %p427
      %p429 = scmp.ne.s32.totalorder %s421, %s423
      %p430 = scmp.eq.s32.totalorder %s39, 1
      %p431 = por %p429, %p430
      %p432 = scmp.ne.s32.totalorder %s423, %s424
      %p433 = scmp.eq.s32.totalorder %s39, 0
      %p434 = por %p432, %p433
      %p435 = scmp.ne.s32.totalorder %s423, %s424
      %p436 = scmp.eq.s32.totalorder %s40, 1
      %p437 = por %p435, %p436
      %p439 = scmp.ne.s32.totalorder %s424, %s438
      %p440 = scmp.eq.s32.totalorder %s40, 0
      %p441 = por %p439, %p440
      %s442 = ssub.s32 %s41, %s53
      %s443 = ssub.s32 %s42, %s49
      %s444 = sor.u32 %s442, %s443
      %p445 = scmp.eq.s32.totalorder %s444, 0
      %s447 = sadd.s32 %s446, 1
      %s448 = scalar_select %p445, %s446, %s447
      %p451 = pneg %p445
      %p452 = scmp.eq.s32.totalorder %s34, 1
      %p453 = por %p451, %p452
      %p454 = scmp.ne.s32.totalorder %s446, %s449
      %p455 = scmp.eq.s32.totalorder %s34, 0
      %p456 = por %p454, %p455
      %p457 = scmp.ne.s32.totalorder %s446, %s449
      %p458 = scmp.eq.s32.totalorder %s39, 1
      %p459 = por %p457, %p458
      %p460 = scmp.ne.s32.totalorder %s449, %s450
      %p461 = scmp.eq.s32.totalorder %s39, 0
      %p462 = por %p460, %p461
      %p463 = scmp.ne.s32.totalorder %s449, %s450
      %p464 = scmp.eq.s32.totalorder %s40, 1
      %p465 = por %p463, %p464
      %p467 = scmp.ne.s32.totalorder %s450, %s466
      %p468 = scmp.eq.s32.totalorder %s40, 0
      %p469 = por %p467, %p468
      %p470 = scmp.le.s32.totalorder 1, %s34
      %p471 = scmp.lt.s32.totalorder %s34, 3
      %p472 = pnand %p470, %p471
      %p473 = pneg %p472
      // Predicated region
      $region9: #{tpu_custom_call.1} parent=5 // pred_check
        _
      $region10: #{tpu_custom_call.1} parent=5 // pred_check_branch
        %475 = sbr.rel (%p472) target = $region12
      $region11: #{tpu_custom_call.1} parent=5 // pred_region
        %s476 = ssub.s32 %s34, 1
        // Predicated region
        $region13: #{tpu_custom_call.1} parent=11 // pred_check
          %p477 = pneg %p119
        $region14: #{tpu_custom_call.1} parent=11 // pred_check_branch
          %479 = sbr.rel (%p477) target = $region16
        $region15: #{tpu_custom_call.1} parent=11 // pred_region
          _
        $region16: #{tpu_custom_call.1} parent=11 // pred_fallthru
          _
        // Predicated region
        $region17: #{tpu_custom_call.1} parent=11 // pred_check
          %p480 = pneg %p140
        $region18: #{tpu_custom_call.1} parent=11 // pred_check_branch
          %482 = sbr.rel (%p480) target = $region20
        $region19: #{tpu_custom_call.1} parent=11 // pred_region
          _
        $region20: #{tpu_custom_call.1} parent=11 // pred_fallthru
          _
        // Predicated region
        $region21: #{tpu_custom_call.1} parent=11 // pred_check
          %p483 = pneg %p161
        $region22: #{tpu_custom_call.1} parent=11 // pred_check_branch
          %485 = sbr.rel (%p483) target = $region24
        $region23: #{tpu_custom_call.1} parent=11 // pred_region
          _
        $region24: #{tpu_custom_call.1} parent=11 // pred_fallthru
          _
        // Predicated region
        $region25: #{tpu_custom_call.1} parent=11 // pred_check
          %p486 = pneg %p182
        $region26: #{tpu_custom_call.1} parent=11 // pred_check_branch
          %488 = sbr.rel (%p486) target = $region28
        $region27: #{tpu_custom_call.1} parent=11 // pred_region
          %490 = vsyncadd [#allocation8], 0
          %s491 = sshll.u32 %s5, 4
          %s492 = int_to_ptr.hbm [resolvable:$true] %s491
          %s493 = sshll.u32 [#allocation9], 4
          %s494 = int_to_ptr.vmem [resolvable:$true] %s493
          %499 = dma.hbm_to_vmem [thread:$0]  %s492, 512, %s494, [#allocation8], 128, 128, 8
        $region28: #{tpu_custom_call.1} parent=11 // pred_fallthru
          _
        // Predicated region
        $region29: #{tpu_custom_call.1} parent=11 // pred_check
          %p500 = pneg %p203
        $region30: #{tpu_custom_call.1} parent=11 // pred_check_branch
          %502 = sbr.rel (%p500) target = $region32
        $region31: #{tpu_custom_call.1} parent=11 // pred_region
          _
        $region32: #{tpu_custom_call.1} parent=11 // pred_fallthru
          _
        // Predicated region
        $region33: #{tpu_custom_call.1} parent=11 // pred_check
          %p503 = pneg %p224
        $region34: #{tpu_custom_call.1} parent=11 // pred_check_branch
          %505 = sbr.rel (%p503) target = $region36
        $region35: #{tpu_custom_call.1} parent=11 // pred_region
          _
        $region36: #{tpu_custom_call.1} parent=11 // pred_fallthru
          _
        // Predicated region
        $region37: #{tpu_custom_call.1} parent=11 // pred_check
          %p506 = pneg %p245
        $region38: #{tpu_custom_call.1} parent=11 // pred_check_branch
          %508 = sbr.rel (%p506) target = $region40
        $region39: #{tpu_custom_call.1} parent=11 // pred_region
          _
        $region40: #{tpu_custom_call.1} parent=11 // pred_fallthru
          _
        // Predicated region
        $region41: #{tpu_custom_call.1} parent=11 // pred_check
          %p509 = pneg %p266
        $region42: #{tpu_custom_call.1} parent=11 // pred_check_branch
          %511 = sbr.rel (%p509) target = $region44
        $region43: #{tpu_custom_call.1} parent=11 // pred_region
          _
        $region44: #{tpu_custom_call.1} parent=11 // pred_fallthru
          _
        // Predicated region
        $region45: #{tpu_custom_call.1} parent=11 // pred_check
          %p512 = pneg %p287
        $region46: #{tpu_custom_call.1} parent=11 // pred_check_branch
          %514 = sbr.rel (%p512) target = $region48
        $region47: #{tpu_custom_call.1} parent=11 // pred_region
          %516 = vsyncadd [#allocation11], 0
          %s517 = sshll.u32 %s10, 4
          %s518 = int_to_ptr.hbm [resolvable:$true] %s517
          %s519 = sshll.u32 [#allocation10], 4
          %s520 = int_to_ptr.vmem [resolvable:$true] %s519
          %525 = dma.hbm_to_vmem [thread:$0]  %s518, 512, %s520, [#allocation11], 128, 128, 8
        $region48: #{tpu_custom_call.1} parent=11 // pred_fallthru
          _
        // Predicated region
        $region49: #{tpu_custom_call.1} parent=11 // pred_check
          %p526 = pneg %p308
        $region50: #{tpu_custom_call.1} parent=11 // pred_check_branch
          %528 = sbr.rel (%p526) target = $region52
        $region51: #{tpu_custom_call.1} parent=11 // pred_region
          _
        $region52: #{tpu_custom_call.1} parent=11 // pred_fallthru
          _
        // Predicated region
        $region53: #{tpu_custom_call.1} parent=11 // pred_check
          %p529 = pneg %p329
        $region54: #{tpu_custom_call.1} parent=11 // pred_check_branch
          %531 = sbr.rel (%p529) target = $region56
        $region55: #{tpu_custom_call.1} parent=11 // pred_region
          _
        $region56: #{tpu_custom_call.1} parent=11 // pred_fallthru
          _
        // Predicated region
        $region57: #{tpu_custom_call.1} parent=11 // pred_check
          %p532 = pneg %p350
        $region58: #{tpu_custom_call.1} parent=11 // pred_check_branch
          %534 = sbr.rel (%p532) target = $region60
        $region59: #{tpu_custom_call.1} parent=11 // pred_region
          _
        $region60: #{tpu_custom_call.1} parent=11 // pred_fallthru
          _
        // Predicated region
        $region61: #{tpu_custom_call.1} parent=11 // pred_check
          %p535 = pneg %p371
        $region62: #{tpu_custom_call.1} parent=11 // pred_check_branch
          %537 = sbr.rel (%p535) target = $region64
        $region63: #{tpu_custom_call.1} parent=11 // pred_region
          _
        $region64: #{tpu_custom_call.1} parent=11 // pred_fallthru
          _
        // Predicated region
        $region65: #{tpu_custom_call.1} parent=11 // pred_check
          %p538 = pneg %p392
        $region66: #{tpu_custom_call.1} parent=11 // pred_check_branch
          %540 = sbr.rel (%p538) target = $region68
        $region67: #{tpu_custom_call.1} parent=11 // pred_region
          _
        $region68: #{tpu_custom_call.1} parent=11 // pred_fallthru
          _
        // Predicated region
        $region69: #{tpu_custom_call.1} parent=11 // pred_check
          %p541 = pneg %p413
        $region70: #{tpu_custom_call.1} parent=11 // pred_check_branch
          %543 = sbr.rel (%p541) target = $region72
        $region71: #{tpu_custom_call.1} parent=11 // pred_region
          _
        $region72: #{tpu_custom_call.1} parent=11 // pred_fallthru
          _
        // Predicated region
        $region73: #{tpu_custom_call.1} parent=11 // pred_check
          %p544 = pneg %p434
        $region74: #{tpu_custom_call.1} parent=11 // pred_check_branch
          %546 = sbr.rel (%p544) target = $region76
        $region75: #{tpu_custom_call.1} parent=11 // pred_region
          _
        $region76: #{tpu_custom_call.1} parent=11 // pred_fallthru
          _
      $region12: #{tpu_custom_call.1} parent=5 // pred_fallthru
        _
      %p547 = scmp.lt.s32.totalorder %s34, 2
      // Predicated region
      $region77: #{tpu_custom_call.1} parent=5 // pred_check
        %p548 = pneg %p547
      $region78: #{tpu_custom_call.1} parent=5 // pred_check_branch
        %550 = sbr.rel (%p548) target = $region80
      $region79: #{tpu_custom_call.1} parent=5 // pred_region
        // Predicated region
        $region81: #{tpu_custom_call.1} parent=79 // pred_check
          %p551 = pneg %p66
        $region82: #{tpu_custom_call.1} parent=79 // pred_check_branch
          %553 = sbr.rel (%p551) target = $region84
        $region83: #{tpu_custom_call.1} parent=79 // pred_region
          %s554 = sand.u32 %s56, 1
          %s555 = scalar_lea.sflag [#allocation5], %s554
          %s556 = sand.u32 %s56, 1
          %s557 = scalar_lea.vmem [#allocation4], %s556
          %559 = vsyncadd %s555, 0
          %s560 = scalar_lea.hbm %s0, %s41
          %s562 = sshll.u32 %s560, 4
          %s563 = int_to_ptr.hbm [resolvable:$true] %s562
          %s564 = sshll.u32 %s557, 4
          %s565 = int_to_ptr.vmem [resolvable:$true] %s564
          %567 = dma.hbm_to_vmem [thread:$0]  %s563, 16, %s565, %s555
        $region84: #{tpu_custom_call.1} parent=79 // pred_fallthru
          _
        // Predicated region
        $region85: #{tpu_custom_call.1} parent=79 // pred_check
          %p568 = pneg %p92
        $region86: #{tpu_custom_call.1} parent=79 // pred_check_branch
          %570 = sbr.rel (%p568) target = $region88
        $region87: #{tpu_custom_call.1} parent=79 // pred_region
          %s571 = sand.u32 %s34, 1
          %s572 = scalar_lea.sflag [#allocation8], %s571
          %s573 = sand.u32 %s82, 1
          %s574 = smul.addr %s573, 8
          %s575 = scalar_lea.vmem [#allocation7], %s574
          %577 = vsyncadd %s572, 0
          %s578 = smul.addr %s41, 8
          %s579 = scalar_lea.hbm %s1, %s578
          %s581 = sshll.u32 %s579, 4
          %s582 = int_to_ptr.hbm [resolvable:$true] %s581
          %s583 = sshll.u32 %s575, 4
          %s584 = int_to_ptr.vmem [resolvable:$true] %s583
          %586 = dma.hbm_to_vmem [thread:$0]  %s582, 128, %s584, %s572
        $region88: #{tpu_custom_call.1} parent=79 // pred_fallthru
          _
      $region80: #{tpu_custom_call.1} parent=5 // pred_fallthru
        _
      %p587 = scmp.le.s32.totalorder 1, %s34
      %p588 = scmp.lt.s32.totalorder %s34, 3
      %p589 = pnand %p587, %p588
      %p590 = pneg %p589
      // Predicated region
      $region89: #{tpu_custom_call.1} parent=5 // pred_check
        _
      $region90: #{tpu_custom_call.1} parent=5 // pred_check_branch
        %592 = sbr.rel (%p589) target = $region92
      $region91: #{tpu_custom_call.1} parent=5 // pred_region
        %s593 = ssub.s32 %s34, 1
        %s594 = sand.u32 %s59, 1
        %s595 = scalar_lea.sflag [#allocation5], %s594
        %s596 = sand.u32 %s59, 1
        %s597 = scalar_lea.vmem [#allocation4], %s596
        // Predicated region
        $region93: #{tpu_custom_call.1} parent=91 // pred_check
          %p598 = pneg %p72
        $region94: #{tpu_custom_call.1} parent=91 // pred_check_branch
          %600 = sbr.rel (%p598) target = $region96
        $region95: #{tpu_custom_call.1} parent=91 // pred_region
          %602 = dma.done %s595, 16
        $region96: #{tpu_custom_call.1} parent=91 // pred_fallthru
          _
        %s603 = sand.u32 %s39, 1
        %s604 = scalar_lea.sflag [#allocation8], %s603
        %s605 = sand.u32 %s85, 1
        %s606 = smul.addr %s605, 8
        %s607 = scalar_lea.vmem [#allocation7], %s606
        // Predicated region
        $region97: #{tpu_custom_call.1} parent=91 // pred_check
          %p608 = pneg %p98
        $region98: #{tpu_custom_call.1} parent=91 // pred_check_branch
          %610 = sbr.rel (%p608) target = $region100
        $region99: #{tpu_custom_call.1} parent=91 // pred_region
          %612 = dma.done %s604, 128
        $region100: #{tpu_custom_call.1} parent=91 // pred_fallthru
          _
        // Predicated region
        $region101: #{tpu_custom_call.1} parent=91 // pred_check
          %p613 = pneg %p182
        $region102: #{tpu_custom_call.1} parent=91 // pred_check_branch
          %615 = sbr.rel (%p613) target = $region104
        $region103: #{tpu_custom_call.1} parent=91 // pred_region
          %617 = dma.done [#allocation8], 512
        $region104: #{tpu_custom_call.1} parent=91 // pred_fallthru
          _
        // Predicated region
        $region105: #{tpu_custom_call.1} parent=91 // pred_check
          %p618 = pneg %p287
        $region106: #{tpu_custom_call.1} parent=91 // pred_check_branch
          %620 = sbr.rel (%p618) target = $region108
        $region107: #{tpu_custom_call.1} parent=91 // pred_region
          %622 = dma.done [#allocation11], 512
        $region108: #{tpu_custom_call.1} parent=91 // pred_fallthru
          _
        %s623 = sand.u32 %s59, 1
        %s624 = scalar_lea.sflag [#allocation5], %s623
        %s625 = sand.u32 %s59, 1
        %s626 = scalar_lea.vmem [#allocation4], %s625
        %p627 = pneg %p72
        %p628 = pneg %p69
        %s629 = sand.u32 %s39, 1
        %s630 = scalar_lea.sflag [#allocation8], %s629
        %s631 = sand.u32 %s85, 1
        %s632 = smul.addr %s631, 8
        %s633 = scalar_lea.vmem [#allocation7], %s632
        %p634 = pneg %p98
        %p635 = pneg %p95
        %p636 = pneg %p119
        %p637 = pneg %p116
        %p638 = pneg %p140
        %p639 = pneg %p137
        %p640 = pneg %p161
        %p641 = pneg %p158
        %p642 = pneg %p182
        %p643 = pneg %p179
        %p644 = pneg %p203
        %p645 = pneg %p200
        %p646 = pneg %p224
        %p647 = pneg %p221
        %p648 = pneg %p245
        %p649 = pneg %p242
        %p650 = pneg %p266
        %p651 = pneg %p263
        %p652 = pneg %p287
        %p653 = pneg %p284
        %p654 = pneg %p308
        %p655 = pneg %p305
        %p656 = pneg %p329
        %p657 = pneg %p326
        %p658 = pneg %p350
        %p659 = pneg %p347
        %p660 = pneg %p371
        %p661 = pneg %p368
        %p662 = pneg %p392
        %p663 = pneg %p389
        %p664 = pneg %p413
        %p665 = pneg %p410
        %p666 = pneg %p434
        %p667 = pneg %p431
        %p668 = pneg %p462
        %p669 = pneg %p459
        %s670 = sand.u32 %s449, 1
        %s671 = scalar_lea.sflag [#allocation6], %s670
        %s672 = sand.u32 %s449, 1
        %s673 = smul.addr %s672, 8
        %s674 = scalar_lea.vmem [#allocation12], %s673
        %p675 = scmp.eq.s32.totalorder %s44, 0
        // Predicated region
        $region109: #{tpu_custom_call.1} parent=91 // pred_check
          %p676 = pneg %p675
        $region110: #{tpu_custom_call.1} parent=91 // pred_check_branch
          %678 = sbr.rel (%p676) target = $region112
        $region111: #{tpu_custom_call.1} parent=91 // pred_region
          %v679 = vld [vmem:[%s607] sm:$0xff]
          %v680 = vld [vmem:[%s3] sm:$0xff]
          %v681 = vld [vmem:[%s3 + $0x8] sm:$0xff]
          %v682 = vld [vmem:[%s3 + $0x10] sm:$0xff]
          %v683 = vld [vmem:[%s3 + $0x18] sm:$0xff]
          %v684 = vld [vmem:[%s7] sm:$0x1]
          %v686 = vperm.slane %v684, 0
          %vm688 = vcmask 261120
          %v690 = vsel %vm688, %v679, 0
          %692 = vmatpush.msra.mxu0 0.0
          %693 = vmatpush.msra.mxu0 0.0
          %694 = vmatpush.msra.mxu0 0.0
          %695 = vmatpush.msra.mxu0 0.0
          %696 = vmatpush.msra.mxu0 0.0
          %697 = vmatpush.msra.mxu0 0.0
          %698 = vmatpush.msra.mxu0 0.0
          %699 = vmatpush.msra.mxu0 0.0
          %700 = vmatpush.msra.mxu0 0.0
          %701 = vmatpush.msra.mxu0 0.0
          %702 = vmatpush.msra.mxu0 0.0
          %703 = vmatpush.msra.mxu0 0.0
          %704 = vmatpush.msra.mxu0 %v683
          %705 = vmatpush.msra.mxu0 %v682
          %706 = vmatpush.msra.mxu0 %v681
          %707 = vmatpush.msra.mxu0 %v680
          %708 = vmatmul.f32.gmra.mxu0 %v690
          %v709 = vpop.f32.mrf.mxu0
          %v710 = vadd.f32 %v686, %v709
          %711 = vdwg.mxu0
          %v712 = vld [vmem:[%s4] sm:$0xff]
          %v713 = vld [vmem:[%s4 + $0x8] sm:$0xff]
          %v714 = vld [vmem:[%s4 + $0x10] sm:$0xff]
          %v715 = vld [vmem:[%s4 + $0x18] sm:$0xff]
          %v716 = vld [vmem:[%s8] sm:$0x1]
          %v718 = vperm.slane %v716, 0
          %720 = vmatpush.msra.mxu0 0.0
          %721 = vmatpush.msra.mxu0 0.0
          %722 = vmatpush.msra.mxu0 0.0
          %723 = vmatpush.msra.mxu0 0.0
          %724 = vmatpush.msra.mxu0 0.0
          %725 = vmatpush.msra.mxu0 0.0
          %726 = vmatpush.msra.mxu0 0.0
          %727 = vmatpush.msra.mxu0 0.0
          %728 = vmatpush.msra.mxu0 0.0
          %729 = vmatpush.msra.mxu0 0.0
          %730 = vmatpush.msra.mxu0 0.0
          %731 = vmatpush.msra.mxu0 0.0
          %732 = vmatpush.msra.mxu0 %v715
          %733 = vmatpush.msra.mxu0 %v714
          %734 = vmatpush.msra.mxu0 %v713
          %735 = vmatpush.msra.mxu0 %v712
          %736 = vmatmul.f32.gmra.mxu0 %v690
          %v737 = vpop.f32.mrf.mxu0
          %v738 = vadd.f32 %v718, %v737
          %739 = vdwg.mxu0
          %741 = vrot.lane.b32.xlu0 %v710, 120
          %v742 = vpop.permute.xlu0 %741
          %744 = vrot.lane.b32.xlu0 %v710, 112
          %v745 = vpop.permute.xlu0 %744
          %747 = vrot.lane.b32.xlu0 %v710, 104
          %v748 = vpop.permute.xlu0 %747
          %vm750 = vcmask 64512
          %751 = vst.msk [vmem:[#allocation2] sm:$0xff] %vm750, %v710
          %752 = vst.msk [vmem:[#allocation2 + $0x8] sm:$0xff] %vm750, %v742
          %753 = vst.msk [vmem:[#allocation2 + $0x10] sm:$0xff] %vm750, %v745
          %754 = vst.msk [vmem:[#allocation2 + $0x18] sm:$0xff] %vm750, %v748
          %756 = vrot.lane.b32.xlu0 %v738, 120
          %v757 = vpop.permute.xlu0 %756
          %759 = vrot.lane.b32.xlu0 %v738, 112
          %v760 = vpop.permute.xlu0 %759
          %762 = vrot.lane.b32.xlu0 %v738, 104
          %v763 = vpop.permute.xlu0 %762
          %765 = vst.msk [vmem:[#allocation3] sm:$0xff] %vm750, %v738
          %766 = vst.msk [vmem:[#allocation3 + $0x8] sm:$0xff] %vm750, %v757
          %767 = vst.msk [vmem:[#allocation3 + $0x10] sm:$0xff] %vm750, %v760
          %768 = vst.msk [vmem:[#allocation3 + $0x18] sm:$0xff] %vm750, %v763
        $region112: #{tpu_custom_call.1} parent=91 // pred_fallthru
          _
        %s769 = smul.u32 %s44, 8
        %s770 = scalar_lea.vmem %s607, %s769 [#allocation7]
        %v771 = vld [vmem:[%s770] sm:$0xff]
        %v772 = vld [vmem:[%s597] sm:$0x1]
        %v773 = vld [vmem:[%s2] sm:$0xff]
        %v774 = vld [vmem:[%s2 + $0x8] sm:$0xff]
        %v775 = vld [vmem:[%s2 + $0x10] sm:$0xff]
        %v776 = vld [vmem:[%s2 + $0x18] sm:$0xff]
        %v777 = vld [vmem:[%s6] sm:$0x1]
        %v779 = vperm.slane %v777, 0
        %vm781 = vcmask 261120
        %v783 = vsel %vm781, %v771, 0
        %785 = vmatpush.msra.mxu0 0.0
        %786 = vmatpush.msra.mxu0 0.0
        %787 = vmatpush.msra.mxu0 0.0
        %788 = vmatpush.msra.mxu0 0.0
        %789 = vmatpush.msra.mxu0 0.0
        %790 = vmatpush.msra.mxu0 0.0
        %791 = vmatpush.msra.mxu0 0.0
        %792 = vmatpush.msra.mxu0 0.0
        %793 = vmatpush.msra.mxu0 0.0
        %794 = vmatpush.msra.mxu0 0.0
        %795 = vmatpush.msra.mxu0 0.0
        %796 = vmatpush.msra.mxu0 0.0
        %797 = vmatpush.msra.mxu0 %v776
        %798 = vmatpush.msra.mxu0 %v775
        %799 = vmatpush.msra.mxu0 %v774
        %800 = vmatpush.msra.mxu0 %v773
        %801 = vmatmul.f32.gmra.mxu0 %v783
        %v802 = vpop.f32.mrf.mxu0
        %v803 = vadd.f32 %v779, %v802
        %804 = vdwg.mxu0
        %v805 = vmul.f32 %v803, 0.35355338
        %807 = vrot.lane.b32.xlu0 %v805, 120
        %v808 = vpop.permute.xlu0 %807
        %809 = vrot.lane.b32.xlu0 %v805, 112
        %v810 = vpop.permute.xlu0 %809
        %811 = vrot.lane.b32.xlu0 %v805, 104
        %v812 = vpop.permute.xlu0 %811
        %v813 = vld [vmem:[#allocation2] sm:$0xff]
        %v814 = vld [vmem:[#allocation2 + $0x8] sm:$0xff]
        %v815 = vld [vmem:[#allocation2 + $0x10] sm:$0xff]
        %v816 = vld [vmem:[#allocation2 + $0x18] sm:$0xff]
        %v817 = vld [vmem:[#allocation3] sm:$0xff]
        %v818 = vld [vmem:[#allocation3 + $0x8] sm:$0xff]
        %v819 = vld [vmem:[#allocation3 + $0x10] sm:$0xff]
        %v820 = vld [vmem:[#allocation3 + $0x18] sm:$0xff]
        %v822 = vperm.slane %v772, 0
        %vm824 = vcmask 64512
        %v825 = vsel %vm824, %v805, 0
        %v828 = vsel %vm824, %v813, 0
        %830 = vmatpush.xpose.msra.mxu0 0.0
        %831 = vmatpush.xpose.msra.mxu0 0.0
        %832 = vmatpush.xpose.msra.mxu0 0.0
        %833 = vmatpush.xpose.msra.mxu0 0.0
        %834 = vmatpush.xpose.msra.mxu0 0.0
        %835 = vmatpush.xpose.msra.mxu0 0.0
        %836 = vmatpush.xpose.msra.mxu0 0.0
        %837 = vmatpush.xpose.msra.mxu0 0.0
        %838 = vmatpush.xpose.msra.mxu0 0.0
        %839 = vmatpush.xpose.msra.mxu0 0.0
        %840 = vmatpush.xpose.msra.mxu0 0.0
        %841 = vmatpush.xpose.msra.mxu0 0.0
        %842 = vmatpush.xpose.msra.mxu0 0.0
        %843 = vmatpush.xpose.msra.mxu0 0.0
        %844 = vmatpush.xpose.msra.mxu0 0.0
        %845 = vmatpush.xpose.msra.mxu0 %v828
        %846 = vmatmul.f32.gmra.mxu0 %v825
        %v847 = vpop.f32.mrf.mxu0
        %v848 = vadd.f32 %v822, %v847
        %849 = vdwg.mxu0
        %v850 = vsel %vm824, %v808, 0
        %v853 = vsel %vm824, %v814, 0
        %855 = vmatpush.xpose.msra.mxu0 0.0
        %856 = vmatpush.xpose.msra.mxu0 0.0
        %857 = vmatpush.xpose.msra.mxu0 0.0
        %858 = vmatpush.xpose.msra.mxu0 0.0
        %859 = vmatpush.xpose.msra.mxu0 0.0
        %860 = vmatpush.xpose.msra.mxu0 0.0
        %861 = vmatpush.xpose.msra.mxu0 0.0
        %862 = vmatpush.xpose.msra.mxu0 0.0
        %863 = vmatpush.xpose.msra.mxu0 0.0
        %864 = vmatpush.xpose.msra.mxu0 0.0
        %865 = vmatpush.xpose.msra.mxu0 0.0
        %866 = vmatpush.xpose.msra.mxu0 0.0
        %867 = vmatpush.xpose.msra.mxu0 0.0
        %868 = vmatpush.xpose.msra.mxu0 0.0
        %869 = vmatpush.xpose.msra.mxu0 0.0
        %870 = vmatpush.xpose.msra.mxu0 %v853
        %871 = vmatmul.f32.gmra.mxu0 %v850
        %v872 = vpop.f32.mrf.mxu0
        %v873 = vadd.f32 %v822, %v872
        %874 = vdwg.mxu0
        %v875 = vsel %vm824, %v810, 0
        %v878 = vsel %vm824, %v815, 0
        %880 = vmatpush.xpose.msra.mxu0 0.0
        %881 = vmatpush.xpose.msra.mxu0 0.0
        %882 = vmatpush.xpose.msra.mxu0 0.0
        %883 = vmatpush.xpose.msra.mxu0 0.0
        %884 = vmatpush.xpose.msra.mxu0 0.0
        %885 = vmatpush.xpose.msra.mxu0 0.0
        %886 = vmatpush.xpose.msra.mxu0 0.0
        %887 = vmatpush.xpose.msra.mxu0 0.0
        %888 = vmatpush.xpose.msra.mxu0 0.0
        %889 = vmatpush.xpose.msra.mxu0 0.0
        %890 = vmatpush.xpose.msra.mxu0 0.0
        %891 = vmatpush.xpose.msra.mxu0 0.0
        %892 = vmatpush.xpose.msra.mxu0 0.0
        %893 = vmatpush.xpose.msra.mxu0 0.0
        %894 = vmatpush.xpose.msra.mxu0 0.0
        %895 = vmatpush.xpose.msra.mxu0 %v878
        %896 = vmatmul.f32.gmra.mxu0 %v875
        %v897 = vpop.f32.mrf.mxu0
        %v898 = vadd.f32 %v822, %v897
        %899 = vdwg.mxu0
        %v900 = vsel %vm824, %v812, 0
        %v903 = vsel %vm824, %v816, 0
        %905 = vmatpush.xpose.msra.mxu0 0.0
        %906 = vmatpush.xpose.msra.mxu0 0.0
        %907 = vmatpush.xpose.msra.mxu0 0.0
        %908 = vmatpush.xpose.msra.mxu0 0.0
        %909 = vmatpush.xpose.msra.mxu0 0.0
        %910 = vmatpush.xpose.msra.mxu0 0.0
        %911 = vmatpush.xpose.msra.mxu0 0.0
        %912 = vmatpush.xpose.msra.mxu0 0.0
        %913 = vmatpush.xpose.msra.mxu0 0.0
        %914 = vmatpush.xpose.msra.mxu0 0.0
        %915 = vmatpush.xpose.msra.mxu0 0.0
        %916 = vmatpush.xpose.msra.mxu0 0.0
        %917 = vmatpush.xpose.msra.mxu0 0.0
        %918 = vmatpush.xpose.msra.mxu0 0.0
        %919 = vmatpush.xpose.msra.mxu0 0.0
        %920 = vmatpush.xpose.msra.mxu0 %v903
        %921 = vmatmul.f32.gmra.mxu0 %v900
        %v922 = vpop.f32.mrf.mxu0
        %v923 = vadd.f32 %v822, %v922
        %924 = vdwg.mxu0
        %v925 = vsel %vm824, %v848, -inf
        %926 = vmax.xlane.f32.xlu0 %v925
        %v927 = vpop.xlane.xlu0 %926
        %v928 = vsel %vm824, %v873, -inf
        %929 = vmax.xlane.f32.xlu0 %v928
        %v930 = vpop.xlane.xlu0 %929
        %v931 = vsel %vm824, %v898, -inf
        %932 = vmax.xlane.f32.xlu0 %v931
        %v933 = vpop.xlane.xlu0 %932
        %v934 = vsel %vm824, %v923, -inf
        %935 = vmax.xlane.f32.xlu0 %v934
        %v936 = vpop.xlane.xlu0 %935
        %v937 = vsub.f32 %v848, %v927
        %v938 = vsub.f32 %v873, %v930
        %v939 = vsub.f32 %v898, %v933
        %v940 = vsub.f32 %v923, %v936
        %v941 = vmul.f32 %v937, 1.442695
        %v942 = vpow.pop %v941
        %v943 = vmul.f32 %v938, 1.442695
        %v944 = vpow.pop %v943
        %v945 = vmul.f32 %v939, 1.442695
        %v946 = vpow.pop %v945
        %v947 = vmul.f32 %v940, 1.442695
        %v948 = vpow.pop %v947
        %v949 = vsel %vm824, %v942, 0.0
        %950 = vadd.xlane.f32.xlu0 %v949
        %v951 = vpop.xlane.xlu0 %950
        %v952 = vsel %vm824, %v944, 0.0
        %953 = vadd.xlane.f32.xlu0 %v952
        %v954 = vpop.xlane.xlu0 %953
        %v955 = vsel %vm824, %v946, 0.0
        %956 = vadd.xlane.f32.xlu0 %v955
        %v957 = vpop.xlane.xlu0 %956
        %v958 = vsel %vm824, %v948, 0.0
        %959 = vadd.xlane.f32.xlu0 %v958
        %v960 = vpop.xlane.xlu0 %959
        %v961 = vrcp.pop %v951
        %v962 = vrcp.pop %v954
        %v963 = vrcp.pop %v957
        %v964 = vrcp.pop %v960
        %v965 = vmul.f32 %v942, %v961
        %v966 = vmul.f32 %v944, %v962
        %v967 = vmul.f32 %v946, %v963
        %v968 = vmul.f32 %v948, %v964
        %v970 = vsel %vm824, %v965, 0
        %972 = vmatpush.msra.mxu0 0.0
        %973 = vmatpush.msra.mxu0 0.0
        %974 = vmatpush.msra.mxu0 0.0
        %975 = vmatpush.msra.mxu0 0.0
        %976 = vmatpush.msra.mxu0 0.0
        %977 = vmatpush.msra.mxu0 0.0
        %978 = vmatpush.msra.mxu0 0.0
        %979 = vmatpush.msra.mxu0 0.0
        %980 = vmatpush.msra.mxu0 0.0
        %981 = vmatpush.msra.mxu0 0.0
        %982 = vmatpush.msra.mxu0 0.0
        %983 = vmatpush.msra.mxu0 0.0
        %984 = vmatpush.msra.mxu0 0.0
        %985 = vmatpush.msra.mxu0 0.0
        %986 = vmatpush.msra.mxu0 0.0
        %987 = vmatpush.msra.mxu0 %v817
        %988 = vmatmul.f32.gmra.mxu0 %v970
        %v989 = vpop.f32.mrf.mxu0
        %v990 = vadd.f32 0.0, %v989
        %991 = vdwg.mxu0
        %v993 = vsel %vm824, %v966, 0
        %995 = vmatpush.msra.mxu0 0.0
        %996 = vmatpush.msra.mxu0 0.0
        %997 = vmatpush.msra.mxu0 0.0
        %998 = vmatpush.msra.mxu0 0.0
        %999 = vmatpush.msra.mxu0 0.0
        %1000 = vmatpush.msra.mxu0 0.0
        %1001 = vmatpush.msra.mxu0 0.0
        %1002 = vmatpush.msra.mxu0 0.0
        %1003 = vmatpush.msra.mxu0 0.0
        %1004 = vmatpush.msra.mxu0 0.0
        %1005 = vmatpush.msra.mxu0 0.0
        %1006 = vmatpush.msra.mxu0 0.0
        %1007 = vmatpush.msra.mxu0 0.0
        %1008 = vmatpush.msra.mxu0 0.0
        %1009 = vmatpush.msra.mxu0 0.0
        %1010 = vmatpush.msra.mxu0 %v818
        %1011 = vmatmul.f32.gmra.mxu0 %v993
        %v1012 = vpop.f32.mrf.mxu0
        %v1013 = vadd.f32 0.0, %v1012
        %1014 = vdwg.mxu0
        %v1016 = vsel %vm824, %v967, 0
        %1018 = vmatpush.msra.mxu0 0.0
        %1019 = vmatpush.msra.mxu0 0.0
        %1020 = vmatpush.msra.mxu0 0.0
        %1021 = vmatpush.msra.mxu0 0.0
        %1022 = vmatpush.msra.mxu0 0.0
        %1023 = vmatpush.msra.mxu0 0.0
        %1024 = vmatpush.msra.mxu0 0.0
        %1025 = vmatpush.msra.mxu0 0.0
        %1026 = vmatpush.msra.mxu0 0.0
        %1027 = vmatpush.msra.mxu0 0.0
        %1028 = vmatpush.msra.mxu0 0.0
        %1029 = vmatpush.msra.mxu0 0.0
        %1030 = vmatpush.msra.mxu0 0.0
        %1031 = vmatpush.msra.mxu0 0.0
        %1032 = vmatpush.msra.mxu0 0.0
        %1033 = vmatpush.msra.mxu0 %v819
        %1034 = vmatmul.f32.gmra.mxu0 %v1016
        %v1035 = vpop.f32.mrf.mxu0
        %v1036 = vadd.f32 0.0, %v1035
        %1037 = vdwg.mxu0
        %v1039 = vsel %vm824, %v968, 0
        %1041 = vmatpush.msra.mxu0 0.0
        %1042 = vmatpush.msra.mxu0 0.0
        %1043 = vmatpush.msra.mxu0 0.0
        %1044 = vmatpush.msra.mxu0 0.0
        %1045 = vmatpush.msra.mxu0 0.0
        %1046 = vmatpush.msra.mxu0 0.0
        %1047 = vmatpush.msra.mxu0 0.0
        %1048 = vmatpush.msra.mxu0 0.0
        %1049 = vmatpush.msra.mxu0 0.0
        %1050 = vmatpush.msra.mxu0 0.0
        %1051 = vmatpush.msra.mxu0 0.0
        %1052 = vmatpush.msra.mxu0 0.0
        %1053 = vmatpush.msra.mxu0 0.0
        %1054 = vmatpush.msra.mxu0 0.0
        %1055 = vmatpush.msra.mxu0 0.0
        %1056 = vmatpush.msra.mxu0 %v820
        %1057 = vmatmul.f32.gmra.mxu0 %v1039
        %v1058 = vpop.f32.mrf.mxu0
        %v1059 = vadd.f32 0.0, %v1058
        %1060 = vdwg.mxu0
        %1062 = vrot.lane.b32.xlu0 %v1013, 8
        %v1063 = vpop.permute.xlu0 %1062
        %1066 = vrot.lane.b32.xlu0 %v1036, 16
        %v1067 = vpop.permute.xlu0 %1066
        %1070 = vrot.lane.b32.xlu0 %v1059, 24
        %v1071 = vpop.permute.xlu0 %1070
        %v1073 = vsel %vm824, %v990, %v1063
        %vm1074 = vcmask 130048
        %v1075 = vsel %vm1074, %v1073, %v1067
        %vm1076 = vcmask 195584
        %v1077 = vsel %vm1076, %v1075, %v1071
        %v1078 = vld [vmem:[#allocation9] sm:$0xff]
        %v1079 = vld [vmem:[#allocation9 + $0x8] sm:$0xff]
        %v1080 = vld [vmem:[#allocation9 + $0x10] sm:$0xff]
        %v1081 = vld [vmem:[#allocation9 + $0x18] sm:$0xff]
        %v1082 = vld [vmem:[%s9] sm:$0x1]
        %v1084 = vperm.slane %v1082, 0
        %v1087 = vsel %vm781, %v1077, 0
        %1089 = vmatpush.msra.mxu0 0.0
        %1090 = vmatpush.msra.mxu0 0.0
        %1091 = vmatpush.msra.mxu0 0.0
        %1092 = vmatpush.msra.mxu0 0.0
        %1093 = vmatpush.msra.mxu0 0.0
        %1094 = vmatpush.msra.mxu0 0.0
        %1095 = vmatpush.msra.mxu0 0.0
        %1096 = vmatpush.msra.mxu0 0.0
        %1097 = vmatpush.msra.mxu0 0.0
        %1098 = vmatpush.msra.mxu0 0.0
        %1099 = vmatpush.msra.mxu0 0.0
        %1100 = vmatpush.msra.mxu0 0.0
        %1101 = vmatpush.msra.mxu0 %v1081
        %1102 = vmatpush.msra.mxu0 %v1080
        %1103 = vmatpush.msra.mxu0 %v1079
        %1104 = vmatpush.msra.mxu0 %v1078
        %1105 = vmatmul.f32.gmra.mxu0 %v1087
        %v1106 = vpop.f32.mrf.mxu0
        %v1107 = vadd.f32 %v1084, %v1106
        %1108 = vdwg.mxu0
        %v1109 = vadd.f32 %v771, %v1107
        %v1110 = vld [vmem:[%s14] sm:$0x1]
        %v1111 = vld [vmem:[%s15] sm:$0x1]
        %v1112 = vsel %vm781, %v1109, 0.0
        %1113 = vadd.xlane.f32.xlu0 %v1112
        %v1114 = vpop.xlane.xlu0 %1113
        %v1115 = vmul.f32 %v1109, %v1109
        %v1116 = vsel %vm781, %v1115, 0.0
        %1117 = vadd.xlane.f32.xlu0 %v1116
        %v1118 = vpop.xlane.xlu0 %1117
        %v1119 = vmul.f32 %v1114, 0.03125
        %v1120 = vmul.f32 %v1118, 0.03125
        %v1121 = vmul.f32 %v1119, %v1119
        %v1122 = vsub.f32 %v1120, %v1121
        %v1123 = vmax.f32 %v1122, 0.0
        %v1124 = vsub.f32 %v1109, %v1119
        %v1125 = vadd.f32 %v1123, 1e-05
        %v1126 = vrsqrt.pop %v1125
        %v1127 = vmul.f32 %v1126, %v1125
        %v1128 = vmul.f32 %v1127, %v1126
        %v1129 = vmul.f32 0.5, %v1128
        %v1130 = vsub.f32 1.5, %v1129
        %v1131 = vmul.f32 %v1126, %v1130
        %vm1132 = vweird.f32 %v1125
        %vm1133 = vweird.f32 %v1126
        %vm1134 = vmor %vm1132, %vm1133
        %v1135 = vsel %vm1134, %v1126, %v1131
        %v1136 = vmul.f32 %v1124, %v1135
        %v1138 = vperm.slane %v1110, 0
        %v1140 = vmul.f32 %v1136, %v1138
        %v1142 = vperm.slane %v1111, 0
        %v1144 = vadd.f32 %v1140, %v1142
        %v1145 = vld [vmem:[#allocation10] sm:$0xff]
        %v1146 = vld [vmem:[#allocation10 + $0x8] sm:$0xff]
        %v1147 = vld [vmem:[#allocation10 + $0x10] sm:$0xff]
        %v1148 = vld [vmem:[#allocation10 + $0x18] sm:$0xff]
        %v1149 = vld [vmem:[%s11] sm:$0x1]
        %v1151 = vperm.slane %v1149, 0
        %v1154 = vsel %vm781, %v1144, 0
        %1156 = vmatpush.msra.mxu0 0.0
        %1157 = vmatpush.msra.mxu0 0.0
        %1158 = vmatpush.msra.mxu0 0.0
        %1159 = vmatpush.msra.mxu0 0.0
        %1160 = vmatpush.msra.mxu0 0.0
        %1161 = vmatpush.msra.mxu0 0.0
        %1162 = vmatpush.msra.mxu0 0.0
        %1163 = vmatpush.msra.mxu0 0.0
        %1164 = vmatpush.msra.mxu0 0.0
        %1165 = vmatpush.msra.mxu0 0.0
        %1166 = vmatpush.msra.mxu0 0.0
        %1167 = vmatpush.msra.mxu0 0.0
        %1168 = vmatpush.msra.mxu0 %v1148
        %1169 = vmatpush.msra.mxu0 %v1147
        %1170 = vmatpush.msra.mxu0 %v1146
        %1171 = vmatpush.msra.mxu0 %v1145
        %1172 = vmatmul.f32.gmra.mxu0 %v1154
        %v1173 = vpop.f32.mrf.mxu0
        %v1174 = vadd.f32 %v1151, %v1173
        %1175 = vdwg.mxu0
        %v1176 = vmax.f32 %v1174, 0.0
        %v1177 = vld [vmem:[%s12] sm:$0xff]
        %v1178 = vld [vmem:[%s12 + $0x8] sm:$0xff]
        %v1179 = vld [vmem:[%s12 + $0x10] sm:$0xff]
        %v1180 = vld [vmem:[%s12 + $0x18] sm:$0xff]
        %v1181 = vld [vmem:[%s12 + $0x20] sm:$0xff]
        %v1182 = vld [vmem:[%s12 + $0x28] sm:$0xff]
        %v1183 = vld [vmem:[%s12 + $0x30] sm:$0xff]
        %v1184 = vld [vmem:[%s12 + $0x38] sm:$0xff]
        %v1185 = vld [vmem:[%s13] sm:$0x1]
        %v1187 = vperm.slane %v1185, 0
        %vm1189 = vcmask 523264
        %v1191 = vsel %vm1189, %v1176, 0
        %1193 = vmatpush.msra.mxu0 0.0
        %1194 = vmatpush.msra.mxu0 0.0
        %1195 = vmatpush.msra.mxu0 0.0
        %1196 = vmatpush.msra.mxu0 0.0
        %1197 = vmatpush.msra.mxu0 0.0
        %1198 = vmatpush.msra.mxu0 0.0
        %1199 = vmatpush.msra.mxu0 0.0
        %1200 = vmatpush.msra.mxu0 0.0
        %1201 = vmatpush.msra.mxu0 %v1184
        %1202 = vmatpush.msra.mxu0 %v1183
        %1203 = vmatpush.msra.mxu0 %v1182
        %1204 = vmatpush.msra.mxu0 %v1181
        %1205 = vmatpush.msra.mxu0 %v1180
        %1206 = vmatpush.msra.mxu0 %v1179
        %1207 = vmatpush.msra.mxu0 %v1178
        %1208 = vmatpush.msra.mxu0 %v1177
        %1209 = vmatmul.f32.gmra.mxu0 %v1191
        %v1210 = vpop.f32.mrf.mxu0
        %v1211 = vadd.f32 %v1187, %v1210
        %1212 = vdwg.mxu0
        %v1213 = vadd.f32 %v1144, %v1211
        %v1214 = vld [vmem:[%s16] sm:$0x1]
        %v1215 = vld [vmem:[%s17] sm:$0x1]
        %v1216 = vsel %vm781, %v1213, 0.0
        %1217 = vadd.xlane.f32.xlu0 %v1216
        %v1218 = vpop.xlane.xlu0 %1217
        %v1219 = vmul.f32 %v1213, %v1213
        %v1220 = vsel %vm781, %v1219, 0.0
        %1221 = vadd.xlane.f32.xlu0 %v1220
        %v1222 = vpop.xlane.xlu0 %1221
        %v1223 = vmul.f32 %v1218, 0.03125
        %v1224 = vmul.f32 %v1222, 0.03125
        %v1225 = vmul.f32 %v1223, %v1223
        %v1226 = vsub.f32 %v1224, %v1225
        %v1227 = vmax.f32 %v1226, 0.0
        %v1228 = vsub.f32 %v1213, %v1223
        %v1229 = vadd.f32 %v1227, 1e-05
        %v1230 = vrsqrt.pop %v1229
        %v1231 = vmul.f32 %v1230, %v1229
        %v1232 = vmul.f32 %v1231, %v1230
        %v1233 = vmul.f32 0.5, %v1232
        %v1234 = vsub.f32 1.5, %v1233
        %v1235 = vmul.f32 %v1230, %v1234
        %vm1236 = vweird.f32 %v1229
        %vm1237 = vweird.f32 %v1230
        %vm1238 = vmor %vm1236, %vm1237
        %v1239 = vsel %vm1238, %v1230, %v1235
        %v1240 = vmul.f32 %v1228, %v1239
        %v1242 = vperm.slane %v1214, 0
        %v1244 = vmul.f32 %v1240, %v1242
        %v1246 = vperm.slane %v1215, 0
        %v1248 = vadd.f32 %v1244, %v1246
        %1249 = vst.msk [vmem:[%s674] sm:$0xff] %vm781, %v1248
        %s1250 = sand.u32 %s449, 1
        %s1251 = scalar_lea.sflag [#allocation6], %s1250
        %s1252 = sand.u32 %s449, 1
        %s1253 = smul.addr %s1252, 8
        %s1254 = scalar_lea.vmem [#allocation12], %s1253
        // Predicated region
        $region113: #{tpu_custom_call.1} parent=91 // pred_check
          %p1255 = pneg %p459
        $region114: #{tpu_custom_call.1} parent=91 // pred_check_branch
          %1257 = sbr.rel (%p1255) target = $region116
        $region115: #{tpu_custom_call.1} parent=91 // pred_region
          %1259 = vsyncadd %s1251, 0
          %s1260 = sadd.s32 %s44, %s43
          %s1261 = smul.addr %s1260, 8
          %s1262 = scalar_lea.hbm %s18, %s1261
          %s1264 = sshll.u32 %s1254, 4
          %s1265 = int_to_ptr.vmem [resolvable:$true] %s1264
          %s1266 = sshll.u32 %s1262, 4
          %s1267 = int_to_ptr.hbm [resolvable:$true] %s1266
          %1269 = dma.vmem_to_hbm [thread:$0]  %s1265, 128, %s1267, %s1251
        $region116: #{tpu_custom_call.1} parent=91 // pred_fallthru
          _
      $region92: #{tpu_custom_call.1} parent=5 // pred_fallthru
        _
      %p1270 = scmp.le.s32.totalorder 2, %s34
      // Predicated region
      $region117: #{tpu_custom_call.1} parent=5 // pred_check
        %p1271 = pneg %p1270
      $region118: #{tpu_custom_call.1} parent=5 // pred_check_branch
        %1273 = sbr.rel (%p1271) target = $region120
      $region119: #{tpu_custom_call.1} parent=5 // pred_region
        %s1274 = ssub.s32 %s34, 2
        // Predicated region
        $region121: #{tpu_custom_call.1} parent=119 // pred_check
          %p1275 = pneg %p465
        $region122: #{tpu_custom_call.1} parent=119 // pred_check_branch
          %1277 = sbr.rel (%p1275) target = $region124
        $region123: #{tpu_custom_call.1} parent=119 // pred_region
          %s1278 = sand.u32 %s450, 1
          %s1279 = scalar_lea.sflag [#allocation6], %s1278
          %s1280 = sand.u32 %s450, 1
          %s1281 = smul.addr %s1280, 8
          %s1282 = scalar_lea.vmem [#allocation12], %s1281
          %1284 = dma.done %s1279, 128
        $region124: #{tpu_custom_call.1} parent=119 // pred_fallthru
          _
      $region120: #{tpu_custom_call.1} parent=5 // pred_fallthru
        _
    $region6: #{tpu_custom_call.1} parent=1 // loop_footer
      %s38 = sadd.s32 1, %s34
    $region7: #{tpu_custom_call.1} parent=1 // loop_footer_branch
      %33 = sbr.rel target = $region3
    $region8: #{tpu_custom_call.1} parent=1 // loop_exit
      _
    %1285 = vsyncpa [#allocation5], 1
    %s1286 = scalar_lea.sflag [#allocation5], 1
    %1287 = vsyncpa %s1286, 1
    %1288 = vsyncpa [#allocation8], 1
    %s1289 = scalar_lea.sflag [#allocation8], 1
    %1290 = vsyncpa %s1289, 1
    %1291 = vsyncpa [#allocation11], 1
    %1292 = vsyncpa [#allocation6], 1
    %s1293 = scalar_lea.sflag [#allocation6], 1
    %1294 = vsyncpa %s1293, 1

</llo_original>
